<compile_context>
chip_gen: v5e
topology: v5e:2x2
jax: 0.10.0
libtpu: 0.0.40
codegen_flags: <defaults>
</compile_context>

<pallas_src>
import functools
import math

import jax
import jax.numpy as jnp
from jax import lax
from jax.experimental import pallas as pl
from jax.experimental.pallas import tpu as pltpu


_VMEM_LIMIT_BYTES = 32 * 1024 * 1024   # explicit scoped-VMEM limit (safe on v5e/v6e/v7x)
_TILE_BUDGET_BYTES = 20 * 1024 * 1024  # per-step tile budget, headroom under the limit


# ----------------------------- kernels -----------------------------

def _fused_patch_kernel(x_ref, w_ref, o_ref, acc_ref):
    # x_ref  : (tile_bh, Wp, Zp, p*Cin)  strided-gathered x slice for this (kh, kw)
    # w_ref  : (p*Cin, Cout)             weight slab for this (kh, kw)
    # o_ref  : (tile_bh*Wp*Zp, Cout)     lane-dense output block (written once)
    # acc_ref: f32 accumulator, resident across the (kh, kw) reduction axes
    kh, kw = pl.program_id(1), pl.program_id(2)

    @pl.when((kh == 0) & (kw == 0))
    def _():
        acc_ref[...] = jnp.zeros_like(acc_ref)

    x = x_ref[...]
    tb, wp, zp, pc = x.shape
    # Lane dim (p*Cin) unchanged and Zp is a sublane multiple -> free relayout.
    lhs = x.reshape(tb * wp * zp, pc)
    acc_ref[...] += jnp.dot(lhs, w_ref[...], preferred_element_type=jnp.float32)

    @pl.when((kh == pl.num_programs(1) - 1) & (kw == pl.num_programs(2) - 1))
    def _():
        o_ref[...] = acc_ref[...].astype(o_ref.dtype)


def _matmul_kernel(x_ref, w_ref, o_ref):
    # Fallback: one (tm, K) @ (K, Cout) MXU matmul per row block, f32 accumulation.
    o_ref[...] = jnp.dot(
        x_ref[...], w_ref[...], preferred_element_type=jnp.float32
    ).astype(o_ref.dtype)


# ----------------------------- tile selection -----------------------------

def _pick_bh_tile(BH, Wp, Zp, pcin, cout, esize, budget=_TILE_BUDGET_BYTES):
    # Per-step VMEM per bh-row: 2x-buffered x block + 2x-buffered out block + f32 acc.
    per_row = Wp * Zp * (2 * pcin * esize + 2 * cout * esize + cout * 4)
    w_bytes = 2 * pcin * cout * esize
    avail = max(budget - w_bytes, per_row)
    tile = max(1, min(BH, avail // per_row))
    if BH >= 2:
        tile = min(tile, pl.cdiv(BH, 2))      # >= 2 row blocks so both v7x TCs get work
    m = 8 // math.gcd(Wp * Zp, 8)             # keep (tile*Wp*Zp) a multiple of 8
    tile = (tile // m) * m
    if tile <= 0:
        tile = BH                             # single full block ("equals full dim" rule)
    return int(tile)


def _pick_row_tile(N, K, cout, esize, budget=_TILE_BUDGET_BYTES, cap=1024):
    per_row = 2 * K * esize + 2 * cout * esize
    w_bytes = 2 * K * cout * esize
    avail = max(budget - w_bytes, per_row)
    tm = min(cap, N, avail // per_row)
    if N >= 16:
        tm = min(tm, pl.cdiv(N, 2))           # >= 2 row blocks for v7x
    tm = max(8, (tm // 8) * 8)                # sublane rule on the (tm, K) block
    return int(tm)


# ----------------------------- pallas_call wrappers -----------------------------

def _downsample_fused(x, w, B, Hp, Wp, Zp, p, Cin, Cout, esize):
    pcin = p * Cin
    BH = B * Hp
    N = BH * Wp * Zp
    K = p * p * pcin

    # Free, contiguous reshapes only -- no im2col materialization in HBM.
    x7 = x.reshape(BH, p, Wp, p, Zp, pcin)        # (bh, kh, wp, kw, zp, kz*Cin)
    w3 = w.reshape(p, p, pcin, Cout)              # (kh, kw, kz*Cin, Cout)

    tile_bh = _pick_bh_tile(BH, Wp, Zp, pcin, Cout, esize)
    rows = tile_bh * Wp * Zp
    grid = (pl.cdiv(BH, tile_bh), p, p)

    cost = pl.CostEstimate(
        flops=2 * N * K * Cout,
        transcendentals=0,
        bytes_accessed=N * K * esize + N * Cout * esize + K * Cout * esize,
    )

    out2 = pl.pallas_call(
        _fused_patch_kernel,
        out_shape=jax.ShapeDtypeStruct((N, Cout), x.dtype),
        grid=grid,
        in_specs=[
            # Strided gather of the (kh, kw) slice; p dims squeezed out of the block.
            pl.BlockSpec(
                (tile_bh, pl.Squeezed(), Wp, pl.Squeezed(), Zp, pcin),
                lambda i, kh, kw: (i, kh, 0, kw, 0, 0),
            ),
            # Tiny per-(kh, kw) weight slab.
            pl.BlockSpec(
                (pl.Squeezed(), pl.Squeezed(), pcin, Cout),
                lambda i, kh, kw: (kh, kw, 0, 0),
            ),
        ],
        out_specs=pl.BlockSpec((rows, Cout), lambda i, kh, kw: (i, 0)),
        scratch_shapes=[pltpu.VMEM((rows, Cout), jnp.float32)],
        compiler_params=pltpu.CompilerParams(
            dimension_semantics=("parallel", "arbitrary", "arbitrary"),
            vmem_limit_bytes=_VMEM_LIMIT_BYTES,
        ),
        cost_estimate=cost,
    )(x7, w3)
    return out2


def _downsample_im2col(x, w, B, Hp, Wp, Zp, p, Cin, Cout, esize):
    # TODO(synk): this path materializes the im2col tensor (one extra HBM pass); it is
    # only used when Zp is not a multiple of the sublane tile, where the fused path's
    # in-kernel reshape would not be a free relayout.
    pcin = p * Cin
    K = p * p * pcin
    N = B * Hp * Wp * Zp

    patches = x.reshape(B, Hp, p, Wp, p, Zp, p, Cin)
    patches = patches.transpose(0, 1, 3, 5, 2, 4, 6, 7).reshape(N, K)
    w_mat = w.reshape(K, Cout)

    tm = _pick_row_tile(N, K, Cout, esize)
    cost = pl.CostEstimate(
        flops=2 * N * K * Cout,
        transcendentals=0,
        bytes_accessed=N * K * esize + N * Cout * esize + K * Cout * esize,
    )

    out2 = pl.pallas_call(
        _matmul_kernel,
        out_shape=jax.ShapeDtypeStruct((N, Cout), x.dtype),
        grid=(pl.cdiv(N, tm),),                       # no pad-to-tm; ragged last block OK
        in_specs=[
            pl.BlockSpec((tm, K), lambda i: (i, 0)),
            pl.BlockSpec((K, Cout), lambda i: (0, 0)),  # weight resident every step
        ],
        out_specs=pl.BlockSpec((tm, Cout), lambda i: (i, 0)),
        compiler_params=pltpu.CompilerParams(
            dimension_semantics=("parallel",),
            vmem_limit_bytes=_VMEM_LIMIT_BYTES,
        ),
        cost_estimate=cost,
    )(patches, w_mat)
    return out2


# ----------------------------- forward wrapper -----------------------------

def downsample(x, weight, patch_size):
    """Forward pass of Downsample.

    x:      (B, H, W, Z, C_in) channels-last
    weight: (C_out, C_in, p, p, p)  -- torch Conv3d weight layout, bias=False
    returns (B, H//p, W//p, Z//p, C_out), dtype = x.dtype (f32 accumulation inside)
    """
    p = int(patch_size)
    B, H, W, Z, Cin = x.shape
    Cout = weight.shape[0]
    Hp, Wp, Zp = H // p, W // p, Z // p

    # Conv3d with stride == kernel floors the output size: crop any remainder.
    x = x[:, : Hp * p, : Wp * p, : Zp * p, :]

    # Weight matched to the channels-last patch layout: (kh, kw, kz, ci) -> co.
    w = jnp.transpose(weight, (2, 3, 4, 1, 0)).astype(x.dtype)   # (p, p, p, Cin, Cout)

    esize = x.dtype.itemsize
    sublane = 8 * max(1, 4 // esize)            # f32: 8, bf16: 16, int8/fp8: 32

    if Zp % sublane == 0:
        out2 = _downsample_fused(x, w, B, Hp, Wp, Zp, p, Cin, Cout, esize)
    else:
        out2 = _downsample_im2col(x, w, B, Hp, Wp, Zp, p, Cin, Cout, esize)

    return out2.reshape(B, Hp, Wp, Zp, Cout)


# ----------------------------- pure-JAX reference (validation) -----------------------------

def downsample_reference(x, weight, patch_size):
    # Mirrors the PyTorch forward exactly: permute -> Conv3d(k=s=p, no bias) -> permute.
    x_ncdhw = jnp.transpose(x, (0, 4, 1, 2, 3))
    y = lax.conv_general_dilated(
        x_ncdhw, weight,
        window_strides=(patch_size,) * 3,
        padding="VALID",
        dimension_numbers=("NCDHW", "OIDHW", "NCDHW"),
    )
    return jnp.transpose(y, (0, 2, 3, 4, 1))


# ----------------------------- demo -----------------------------

if __name__ == "__main__":
    key = jax.random.PRNGKey(0)
    k1, k2, k3, k4 = jax.random.split(key, 4)
    patch = 2

    # Case 1: fused-im2col path (Zp = Z // p is a sublane multiple).
    B, H, W, Z, Cin, Cout = 2, 16, 16, 16, 32, 128
    x = jax.random.normal(k1, (B, H, W, Z, Cin), jnp.float32)
    wgt = jax.random.normal(k2, (Cout, Cin, patch, patch, patch), jnp.float32) * 0.05

    fwd = jax.jit(functools.partial(downsample, patch_size=patch))
    out = jax.block_until_ready(fwd(x, wgt))
    assert out.shape == (B, H // patch, W // patch, Z // patch, Cout)
    assert bool(jnp.all(jnp.isfinite(out)))
    ref = jax.block_until_ready(downsample_reference(x, wgt, patch))
    assert bool(jnp.allclose(out, ref, atol=1e-2, rtol=1e-2)), float(
        jnp.max(jnp.abs(out - ref)))

    # Case 2: fallback (materialized im2col) path, Zp not a sublane multiple.
    B2, H2, W2, Z2, Cin2, Cout2 = 2, 8, 8, 8, 16, 128
    x2 = jax.random.normal(k3, (B2, H2, W2, Z2, Cin2), jnp.float32)
    wgt2 = jax.random.normal(k4, (Cout2, Cin2, patch, patch, patch), jnp.float32) * 0.1
    out2 = jax.block_until_ready(
        jax.jit(functools.partial(downsample, patch_size=patch))(x2, wgt2))
    assert out2.shape == (B2, H2 // patch, W2 // patch, Z2 // patch, Cout2)
    ref2 = jax.block_until_ready(downsample_reference(x2, wgt2, patch))
    assert bool(jnp.allclose(out2, ref2, atol=1e-2, rtol=1e-2)), float(
        jnp.max(jnp.abs(out2 - ref2)))

    print("KERNEL_OK")
</pallas_src>

<mosaic_0001>
module attributes {stable_mosaic.version = 11 : i64} {
  func.func @_fused_patch_kernel(%arg0: i32, %arg1: i32, %arg2: i32, %arg3: memref<8x1x8x1x8x64xf32, #tpu.memory_space<vmem>>, %arg4: memref<1x1x64x128xf32, #tpu.memory_space<vmem>>, %arg5: memref<512x128xf32, #tpu.memory_space<vmem>>, %arg6: memref<512x128xf32, #tpu.memory_space<vmem>>) attributes {dimension_semantics = [#tpu.dimension_semantics<parallel>, #tpu.dimension_semantics<arbitrary>, #tpu.dimension_semantics<arbitrary>], iteration_bounds = array<i64: 2, 2, 2>, scalar_prefetch = 0 : i64, scratch_operands = 1 : i64, tpu.core_type = #tpu.core_type<tc>, window_params = [{transform_indices = @transform_0, window_bounds = array<i64: 8, 1, 8, 1, 8, 64>}, {transform_indices = @transform_1, window_bounds = array<i64: 1, 1, 64, 128>}, {transform_indices = @transform_2, window_bounds = array<i64: 512, 128>}]} {
    %c0_i32 = arith.constant 0 : i32
    %0 = arith.cmpi eq, %arg1, %c0_i32 : i32
    %c0_i32_0 = arith.constant 0 : i32
    %1 = arith.cmpi eq, %arg2, %c0_i32_0 : i32
    %2 = arith.andi %0, %1 : i1
    %3 = arith.extui %2 : i1 to i32
    %c0_i32_1 = arith.constant 0 : i32
    %4 = arith.cmpi ne, %3, %c0_i32_1 : i32
    scf.if %4 {
      %cst_17 = arith.constant 0.000000e+00 : f32
      %19 = vector.broadcast %cst_17 : f32 to vector<512x128xf32>
      %c0_18 = arith.constant 0 : index
      %c0_19 = arith.constant 0 : index
      %20 = vector.load %arg6[%c0_18, %c0_19] : memref<512x128xf32, #tpu.memory_space<vmem>>, vector<512x128xf32>
      tpu.vector_store %arg6[%c0_18, %c0_19], %19 {strides = array<i32>} : memref<512x128xf32, #tpu.memory_space<vmem>>, vector<512x128xf32>,
    } else {
    }
    %c0 = arith.constant 0 : index
    %c0_2 = arith.constant 0 : index
    %c0_3 = arith.constant 0 : index
    %c0_4 = arith.constant 0 : index
    %c0_5 = arith.constant 0 : index
    %c0_6 = arith.constant 0 : index
    %5 = vector.load %arg3[%c0, %c0_2, %c0_3, %c0_4, %c0_5, %c0_6] : memref<8x1x8x1x8x64xf32, #tpu.memory_space<vmem>>, vector<8x1x8x1x8x64xf32>
    %6 = vector.shape_cast %5 : vector<8x1x8x1x8x64xf32> to vector<8x8x8x64xf32>
    %7 = vector.shape_cast %6 : vector<8x8x8x64xf32> to vector<512x64xf32>
    %c0_7 = arith.constant 0 : index
    %c0_8 = arith.constant 0 : index
    %8 = vector.load %arg6[%c0_7, %c0_8] : memref<512x128xf32, #tpu.memory_space<vmem>>, vector<512x128xf32>
    %c0_9 = arith.constant 0 : index
    %c0_10 = arith.constant 0 : index
    %c0_11 = arith.constant 0 : index
    %c0_12 = arith.constant 0 : index
    %9 = vector.load %arg4[%c0_9, %c0_10, %c0_11, %c0_12] : memref<1x1x64x128xf32, #tpu.memory_space<vmem>>, vector<1x1x64x128xf32>
    %10 = vector.shape_cast %9 : vector<1x1x64x128xf32> to vector<64x128xf32>
    %cst = arith.constant dense<0.000000e+00> : vector<512x128xf32>
    %11 = tpu.matmul %7, %10, %cst {dimension_numbers = #tpu.dot_dimension_numbers<[1], [0], [0], [1], [0, 0, 1, 1], [], []>} : vector<512x64xf32>, vector<64x128xf32>, vector<512x128xf32> -> vector<512x128xf32>
    %12 = arith.addf %8, %11 : vector<512x128xf32>
    %c0_13 = arith.constant 0 : index
    %c0_14 = arith.constant 0 : index
    %13 = vector.load %arg6[%c0_13, %c0_14] : memref<512x128xf32, #tpu.memory_space<vmem>>, vector<512x128xf32>
    tpu.vector_store %arg6[%c0_13, %c0_14], %12 {strides = array<i32>} : memref<512x128xf32, #tpu.memory_space<vmem>>, vector<512x128xf32>,
    %c1_i32 = arith.constant 1 : i32
    %14 = arith.cmpi eq, %arg1, %c1_i32 : i32
    %c1_i32_15 = arith.constant 1 : i32
    %15 = arith.cmpi eq, %arg2, %c1_i32_15 : i32
    %16 = arith.andi %14, %15 : i1
    %17 = arith.extui %16 : i1 to i32
    %c0_i32_16 = arith.constant 0 : i32
    %18 = arith.cmpi ne, %17, %c0_i32_16 : i32
    scf.if %18 {
      %c0_17 = arith.constant 0 : index
      %c0_18 = arith.constant 0 : index
      %19 = vector.load %arg6[%c0_17, %c0_18] : memref<512x128xf32, #tpu.memory_space<vmem>>, vector<512x128xf32>
      %c0_19 = arith.constant 0 : index
      %c0_20 = arith.constant 0 : index
      %20 = vector.load %arg5[%c0_19, %c0_20] : memref<512x128xf32, #tpu.memory_space<vmem>>, vector<512x128xf32>
      tpu.vector_store %arg5[%c0_19, %c0_20], %19 {strides = array<i32>} : memref<512x128xf32, #tpu.memory_space<vmem>>, vector<512x128xf32>,
    } else {
    }
    return
  }
  func.func @transform_0(%arg0: i32, %arg1: i32, %arg2: i32) -> (i32, i32, i32, i32, i32, i32) {
    %c0_i32 = arith.constant 0 : i32
    %c0_i32_0 = arith.constant 0 : i32
    %c0_i32_1 = arith.constant 0 : i32
    %c0_i32_2 = arith.constant 0 : i32
    return %arg0, %arg1, %c0_i32, %arg2, %c0_i32_0, %c0_i32_1 : i32, i32, i32, i32, i32, i32
  }
  func.func @transform_1(%arg0: i32, %arg1: i32, %arg2: i32) -> (i32, i32, i32, i32) {
    %c0_i32 = arith.constant 0 : i32
    %c0_i32_0 = arith.constant 0 : i32
    %c0_i32_1 = arith.constant 0 : i32
    return %arg1, %arg2, %c0_i32, %c0_i32_0 : i32, i32, i32, i32
  }
  func.func @transform_2(%arg0: i32, %arg1: i32, %arg2: i32) -> (i32, i32) {
    %c0_i32 = arith.constant 0 : i32
    %c0_i32_0 = arith.constant 0 : i32
    return %arg0, %c0_i32 : i32, i32
  }
}

</mosaic_0001>

<llo_original>
// kernel: downsample.1
$region0: #{downsample.1}
  #allocation0 [shape = 'u32[]', space=smem, size = 0x4, offset = 0x4, fixed_abs, tag = 'smem constant byte address 0x4 - core index']
  #allocation1 [shape = 'u32[72,128]{1,0:T(1,128)}', space=vmem, size = 0x9000, scoped, tag = 'internal scratch']
  #allocation2 [shape = 'f32[512,128]{1,0:T(8,128)}', space=vmem, size = 0x40000, scoped, tag = 'scratch operand']
  %s0 = inlined_call_operand.vmem [shape: f32[16,2,8,2,8,64], index: 0, kind: input, shape index: {}]
  %s1 = inlined_call_operand.vmem [shape: f32[2,2,64,128], index: 1, kind: input, shape index: {}]
  %s2 = inlined_call_operand.hbm [shape: f32[1024,128], index: 2, kind: output, shape index: {}]
  %s3 = sld [smem:[#allocation0]]
  $region87: #{downsample.1} parent=0
    _
  %s5 = ssub.s32 1, %s3
  %s6 = scalar_select 0, %s5, %s3
  $region1: #{downsample.1} parent=0
    #allocation3 [shape = 'u8[524288]{0}', space=vmem, size = 0x80000, scoped, tag = 'input window, operand 0']
    #allocation4 [shape = 'u8[524288]{0}', space=vmem, size = 0x80000, scoped, tag = 'output window, operand 0']
    #allocation5 [shape = 's32[2]{0}', space=sflag, size = 0x8, scoped, tag = 'scoped memory for downsample.1']
    %7 = vsyncpa [#allocation5], 0
    %s8 = scalar_lea.sflag [#allocation5], 1
    %9 = vsyncpa %s8, 0
    loop: start=0, step=1, limit=10
    $region2: #{downsample.1} parent=1 // loop_pre_header
      _
    $region3: #{downsample.1} parent=1 // loop_header
      %s11 = sphi 0, %s15
      %p12 = scmp.ge.s32.totalorder %s11, 10
      %s18 = sphi 0, %s37
      %s19 = sphi 0, %s33
      %s20 = sphi 0, %s29
      %s21 = sphi 0, %s18
      %s22 = sphi 0, %s19
      %s23 = sphi 0, %s20
      %s24 = sphi 0, %s21
      %s25 = sphi 0, %s22
      %s26 = sphi 0, %s23
      %s44 = sphi 0, %s46
      %s47 = sphi 0, %s44
      %s48 = sphi 0, %s47
      %s64 = sphi 0, %s48
      %s72 = sphi 0, %s74
      %s75 = sphi 0, %s72
      %s76 = sphi 0, %s75
      %s92 = sphi 0, %s76
      %s98 = sphi 0, %s100
      %s101 = sphi 0, %s98
      %s102 = sphi 0, %s101
      %s118 = sphi 0, %s102
    $region4: #{downsample.1} parent=1 // loop_header_branch
      %14 = sbr.rel (%p12) target = $region8
    $region5: #{downsample.1} parent=1 // loop_body
      %s16 = ssub.s32 %s11, 1
      %s17 = ssub.s32 %s11, 2
      %s27 = sadd.s32 1, %s20
      %p28 = scmp.ge.s32.totalorder %s27, 2
      %s29 = scalar_select %p28, 0, %s27
      %s30 = sadd.s32 1, %s19
      %s31 = scalar_select %p28, %s30, %s19
      %p32 = scmp.ge.s32.totalorder %s31, 2
      %s33 = scalar_select %p32, 0, %s31
      %s34 = sadd.s32 1, %s18
      %s35 = scalar_select %p32, %s34, %s18
      %p36 = scmp.ge.s32.totalorder %s35, 2
      %s37 = scalar_select %p36, 0, %s35
      %s38 = ssub.s32 %s18, %s37
      %s39 = ssub.s32 %s19, %s33
      %s40 = sor.u32 %s38, %s39
      %s41 = ssub.s32 %s20, %s29
      %s42 = sor.u32 %s40, %s41
      %p43 = scmp.eq.s32.totalorder %s42, 0
      %s45 = sadd.s32 %s44, 1
      %s46 = scalar_select %p43, %s44, %s45
      %p49 = pneg %p43
      %p50 = scmp.eq.s32.totalorder %s11, 7
      %p51 = por %p49, %p50
      %p52 = scmp.ne.s32.totalorder %s44, %s47
      %p53 = scmp.eq.s32.totalorder %s11, 0
      %p54 = por %p52, %p53
      %p55 = scmp.ne.s32.totalorder %s44, %s47
      %p56 = scmp.eq.s32.totalorder %s16, 7
      %p57 = por %p55, %p56
      %p58 = scmp.ne.s32.totalorder %s47, %s48
      %p59 = scmp.eq.s32.totalorder %s16, 0
      %p60 = por %p58, %p59
      %p61 = scmp.ne.s32.totalorder %s47, %s48
      %p62 = scmp.eq.s32.totalorder %s17, 7
      %p63 = por %p61, %p62
      %p65 = scmp.ne.s32.totalorder %s48, %s64
      %p66 = scmp.eq.s32.totalorder %s17, 0
      %p67 = por %p65, %p66
      %s68 = ssub.s32 %s19, %s33
      %s69 = ssub.s32 %s20, %s29
      %s70 = sor.u32 %s68, %s69
      %p71 = scmp.eq.s32.totalorder %s70, 0
      %s73 = sadd.s32 %s72, 1
      %s74 = scalar_select %p71, %s72, %s73
      %p77 = pneg %p71
      %p78 = scmp.eq.s32.totalorder %s11, 7
      %p79 = por %p77, %p78
      %p80 = scmp.ne.s32.totalorder %s72, %s75
      %p81 = scmp.eq.s32.totalorder %s11, 0
      %p82 = por %p80, %p81
      %p83 = scmp.ne.s32.totalorder %s72, %s75
      %p84 = scmp.eq.s32.totalorder %s16, 7
      %p85 = por %p83, %p84
      %p86 = scmp.ne.s32.totalorder %s75, %s76
      %p87 = scmp.eq.s32.totalorder %s16, 0
      %p88 = por %p86, %p87
      %p89 = scmp.ne.s32.totalorder %s75, %s76
      %p90 = scmp.eq.s32.totalorder %s17, 7
      %p91 = por %p89, %p90
      %p93 = scmp.ne.s32.totalorder %s76, %s92
      %p94 = scmp.eq.s32.totalorder %s17, 0
      %p95 = por %p93, %p94
      %s96 = ssub.s32 %s18, %s37
      %p97 = scmp.eq.s32.totalorder %s96, 0
      %s99 = sadd.s32 %s98, 1
      %s100 = scalar_select %p97, %s98, %s99
      %p103 = pneg %p97
      %p104 = scmp.eq.s32.totalorder %s11, 7
      %p105 = por %p103, %p104
      %p106 = scmp.ne.s32.totalorder %s98, %s101
      %p107 = scmp.eq.s32.totalorder %s11, 0
      %p108 = por %p106, %p107
      %p109 = scmp.ne.s32.totalorder %s98, %s101
      %p110 = scmp.eq.s32.totalorder %s16, 7
      %p111 = por %p109, %p110
      %p112 = scmp.ne.s32.totalorder %s101, %s102
      %p113 = scmp.eq.s32.totalorder %s16, 0
      %p114 = por %p112, %p113
      %p115 = scmp.ne.s32.totalorder %s101, %s102
      %p116 = scmp.eq.s32.totalorder %s17, 7
      %p117 = por %p115, %p116
      %p119 = scmp.ne.s32.totalorder %s102, %s118
      %p120 = scmp.eq.s32.totalorder %s17, 0
      %p121 = por %p119, %p120
      %p122 = scmp.le.s32.totalorder 1, %s11
      %p123 = scmp.lt.s32.totalorder %s11, 9
      %p124 = pnand %p122, %p123
      %p125 = pneg %p124
      // Predicated region
      $region9: #{downsample.1} parent=5 // pred_check
        _
      $region10: #{downsample.1} parent=5 // pred_check_branch
        %127 = sbr.rel (%p124) target = $region12
      $region11: #{downsample.1} parent=5 // pred_region
        %s128 = ssub.s32 %s11, 1
      $region12: #{downsample.1} parent=5 // pred_fallthru
        _
      %p129 = scmp.lt.s32.totalorder %s11, 8
      // Predicated region
      $region13: #{downsample.1} parent=5 // pred_check
        %p130 = pneg %p129
      $region14: #{downsample.1} parent=5 // pred_check_branch
        %132 = sbr.rel (%p130) target = $region16
      $region15: #{downsample.1} parent=5 // pred_region
        // Predicated region
        $region17: #{downsample.1} parent=15 // pred_check
          %p133 = pneg %p54
        $region18: #{downsample.1} parent=15 // pred_check_branch
          %135 = sbr.rel (%p133) target = $region20
        $region19: #{downsample.1} parent=15 // pred_region
          %s136 = sand.u32 %s44, 1
          %s137 = sand.u32 %s44, 1
          %s138 = smul.addr %s137, 512
          %s139 = scalar_lea.vmem [#allocation3], %s138
          %s140 = smul.u32 8, %s18
          %s141 = smul.addr %s19, 16
          %s142 = sadd.s32 %s20, %s141
          %s143 = smul.addr %s140, 32
          %s144 = sadd.s32 %s142, %s143
          %s145 = smul.addr %s144, 8
          %s146 = scalar_lea.vmem %s0, %s145
          // Predicated region
          $region21: #{downsample.1} parent=19 // pred_check
            _
          $region22: #{downsample.1} parent=19 // pred_check_branch
            %148 = sbr.rel (0) target = $region24
          $region23: #{downsample.1} parent=19 // pred_region
            // Predicated region
            $region25: #{downsample.1} parent=23 // pred_check
              _
            $region26: #{downsample.1} parent=23 // pred_check_branch
              %150 = sbr.rel (0) target = $region28
            $region27: #{downsample.1} parent=23 // pred_region
              // Predicated region
              $region40: #{downsample.1} parent=27 // pred_check
                _
              $region41: #{downsample.1} parent=27 // pred_check_branch
                %292 = sbr.rel (0) target = $region43
              $region42: #{downsample.1} parent=27 // pred_region
                loop: start=0, step=1, limit=1
                $region44: #{downsample.1} parent=42 // loop_pre_header
                  _
                $region45: #{downsample.1} parent=42 // loop_header
                  %s294 = sphi 0, %s298
                  %p295 = scmp.ge.s32.totalorder %s294, 1
                  %s299 = sphi %s146, %s146
                  %s300 = sphi %s139, %s139
                $region46: #{downsample.1} parent=42 // loop_header_branch
                  %297 = sbr.rel (%p295) target = $region50
                $region47: #{downsample.1} parent=42 // loop_body
                  %v301 = vld [vmem:[%s299] sm:$0xff]
                  %302 = vst [vmem:[%s300] sm:$0xff] %v301
                  %v303 = vld [vmem:[%s299 + $0x10] sm:$0xff]
                  %304 = vst [vmem:[%s300 + $0x8] sm:$0xff] %v303
                  %v305 = vld [vmem:[%s299 + $0x20] sm:$0xff]
                  %306 = vst [vmem:[%s300 + $0x10] sm:$0xff] %v305
                  %v307 = vld [vmem:[%s299 + $0x30] sm:$0xff]
                  %308 = vst [vmem:[%s300 + $0x18] sm:$0xff] %v307
                  %v309 = vld [vmem:[%s299 + $0x40] sm:$0xff]
                  %310 = vst [vmem:[%s300 + $0x20] sm:$0xff] %v309
                  %v311 = vld [vmem:[%s299 + $0x50] sm:$0xff]
                  %312 = vst [vmem:[%s300 + $0x28] sm:$0xff] %v311
                  %v313 = vld [vmem:[%s299 + $0x60] sm:$0xff]
                  %314 = vst [vmem:[%s300 + $0x30] sm:$0xff] %v313
                  %v315 = vld [vmem:[%s299 + $0x70] sm:$0xff]
                  %316 = vst [vmem:[%s300 + $0x38] sm:$0xff] %v315
                  %v317 = vld [vmem:[%s299 + $0x100] sm:$0xff]
                  %318 = vst [vmem:[%s300 + $0x40] sm:$0xff] %v317
                  %v319 = vld [vmem:[%s299 + $0x110] sm:$0xff]
                  %320 = vst [vmem:[%s300 + $0x48] sm:$0xff] %v319
                  %v321 = vld [vmem:[%s299 + $0x120] sm:$0xff]
                  %322 = vst [vmem:[%s300 + $0x50] sm:$0xff] %v321
                  %v323 = vld [vmem:[%s299 + $0x130] sm:$0xff]
                  %324 = vst [vmem:[%s300 + $0x58] sm:$0xff] %v323
                  %v325 = vld [vmem:[%s299 + $0x140] sm:$0xff]
                  %326 = vst [vmem:[%s300 + $0x60] sm:$0xff] %v325
                  %v327 = vld [vmem:[%s299 + $0x150] sm:$0xff]
                  %328 = vst [vmem:[%s300 + $0x68] sm:$0xff] %v327
                  %v329 = vld [vmem:[%s299 + $0x160] sm:$0xff]
                  %330 = vst [vmem:[%s300 + $0x70] sm:$0xff] %v329
                  %v331 = vld [vmem:[%s299 + $0x170] sm:$0xff]
                  %332 = vst [vmem:[%s300 + $0x78] sm:$0xff] %v331
                  %v333 = vld [vmem:[%s299 + $0x200] sm:$0xff]
                  %334 = vst [vmem:[%s300 + $0x80] sm:$0xff] %v333
                  %v335 = vld [vmem:[%s299 + $0x210] sm:$0xff]
                  %336 = vst [vmem:[%s300 + $0x88] sm:$0xff] %v335
                  %v337 = vld [vmem:[%s299 + $0x220] sm:$0xff]
                  %338 = vst [vmem:[%s300 + $0x90] sm:$0xff] %v337
                  %v339 = vld [vmem:[%s299 + $0x230] sm:$0xff]
                  %340 = vst [vmem:[%s300 + $0x98] sm:$0xff] %v339
                  %v341 = vld [vmem:[%s299 + $0x240] sm:$0xff]
                  %342 = vst [vmem:[%s300 + $0xa0] sm:$0xff] %v341
                  %v343 = vld [vmem:[%s299 + $0x250] sm:$0xff]
                  %344 = vst [vmem:[%s300 + $0xa8] sm:$0xff] %v343
                  %v345 = vld [vmem:[%s299 + $0x260] sm:$0xff]
                  %346 = vst [vmem:[%s300 + $0xb0] sm:$0xff] %v345
                  %v347 = vld [vmem:[%s299 + $0x270] sm:$0xff]
                  %348 = vst [vmem:[%s300 + $0xb8] sm:$0xff] %v347
                  %v349 = vld [vmem:[%s299 + $0x300] sm:$0xff]
                  %350 = vst [vmem:[%s300 + $0xc0] sm:$0xff] %v349
                  %v351 = vld [vmem:[%s299 + $0x310] sm:$0xff]
                  %352 = vst [vmem:[%s300 + $0xc8] sm:$0xff] %v351
                  %v353 = vld [vmem:[%s299 + $0x320] sm:$0xff]
                  %354 = vst [vmem:[%s300 + $0xd0] sm:$0xff] %v353
                  %v355 = vld [vmem:[%s299 + $0x330] sm:$0xff]
                  %356 = vst [vmem:[%s300 + $0xd8] sm:$0xff] %v355
                  %v357 = vld [vmem:[%s299 + $0x340] sm:$0xff]
                  %358 = vst [vmem:[%s300 + $0xe0] sm:$0xff] %v357
                  %v359 = vld [vmem:[%s299 + $0x350] sm:$0xff]
                  %360 = vst [vmem:[%s300 + $0xe8] sm:$0xff] %v359
                  %v361 = vld [vmem:[%s299 + $0x360] sm:$0xff]
                  %362 = vst [vmem:[%s300 + $0xf0] sm:$0xff] %v361
                  %v363 = vld [vmem:[%s299 + $0x370] sm:$0xff]
                  %364 = vst [vmem:[%s300 + $0xf8] sm:$0xff] %v363
                  %v365 = vld [vmem:[%s299 + $0x400] sm:$0xff]
                  %366 = vst [vmem:[%s300 + $0x100] sm:$0xff] %v365
                  %v367 = vld [vmem:[%s299 + $0x410] sm:$0xff]
                  %368 = vst [vmem:[%s300 + $0x108] sm:$0xff] %v367
                  %v369 = vld [vmem:[%s299 + $0x420] sm:$0xff]
                  %370 = vst [vmem:[%s300 + $0x110] sm:$0xff] %v369
                  %v371 = vld [vmem:[%s299 + $0x430] sm:$0xff]
                  %372 = vst [vmem:[%s300 + $0x118] sm:$0xff] %v371
                  %v373 = vld [vmem:[%s299 + $0x440] sm:$0xff]
                  %374 = vst [vmem:[%s300 + $0x120] sm:$0xff] %v373
                  %v375 = vld [vmem:[%s299 + $0x450] sm:$0xff]
                  %376 = vst [vmem:[%s300 + $0x128] sm:$0xff] %v375
                  %v377 = vld [vmem:[%s299 + $0x460] sm:$0xff]
                  %378 = vst [vmem:[%s300 + $0x130] sm:$0xff] %v377
                  %v379 = vld [vmem:[%s299 + $0x470] sm:$0xff]
                  %380 = vst [vmem:[%s300 + $0x138] sm:$0xff] %v379
                  %v381 = vld [vmem:[%s299 + $0x500] sm:$0xff]
                  %382 = vst [vmem:[%s300 + $0x140] sm:$0xff] %v381
                  %v383 = vld [vmem:[%s299 + $0x510] sm:$0xff]
                  %384 = vst [vmem:[%s300 + $0x148] sm:$0xff] %v383
                  %v385 = vld [vmem:[%s299 + $0x520] sm:$0xff]
                  %386 = vst [vmem:[%s300 + $0x150] sm:$0xff] %v385
                  %v387 = vld [vmem:[%s299 + $0x530] sm:$0xff]
                  %388 = vst [vmem:[%s300 + $0x158] sm:$0xff] %v387
                  %v389 = vld [vmem:[%s299 + $0x540] sm:$0xff]
                  %390 = vst [vmem:[%s300 + $0x160] sm:$0xff] %v389
                  %v391 = vld [vmem:[%s299 + $0x550] sm:$0xff]
                  %392 = vst [vmem:[%s300 + $0x168] sm:$0xff] %v391
                  %v393 = vld [vmem:[%s299 + $0x560] sm:$0xff]
                  %394 = vst [vmem:[%s300 + $0x170] sm:$0xff] %v393
                  %v395 = vld [vmem:[%s299 + $0x570] sm:$0xff]
                  %396 = vst [vmem:[%s300 + $0x178] sm:$0xff] %v395
                  %v397 = vld [vmem:[%s299 + $0x600] sm:$0xff]
                  %398 = vst [vmem:[%s300 + $0x180] sm:$0xff] %v397
                  %v399 = vld [vmem:[%s299 + $0x610] sm:$0xff]
                  %400 = vst [vmem:[%s300 + $0x188] sm:$0xff] %v399
                  %v401 = vld [vmem:[%s299 + $0x620] sm:$0xff]
                  %402 = vst [vmem:[%s300 + $0x190] sm:$0xff] %v401
                  %v403 = vld [vmem:[%s299 + $0x630] sm:$0xff]
                  %404 = vst [vmem:[%s300 + $0x198] sm:$0xff] %v403
                  %v405 = vld [vmem:[%s299 + $0x640] sm:$0xff]
                  %406 = vst [vmem:[%s300 + $0x1a0] sm:$0xff] %v405
                  %v407 = vld [vmem:[%s299 + $0x650] sm:$0xff]
                  %408 = vst [vmem:[%s300 + $0x1a8] sm:$0xff] %v407
                  %v409 = vld [vmem:[%s299 + $0x660] sm:$0xff]
                  %410 = vst [vmem:[%s300 + $0x1b0] sm:$0xff] %v409
                  %v411 = vld [vmem:[%s299 + $0x670] sm:$0xff]
                  %412 = vst [vmem:[%s300 + $0x1b8] sm:$0xff] %v411
                  %v413 = vld [vmem:[%s299 + $0x700] sm:$0xff]
                  %414 = vst [vmem:[%s300 + $0x1c0] sm:$0xff] %v413
                  %v415 = vld [vmem:[%s299 + $0x710] sm:$0xff]
                  %416 = vst [vmem:[%s300 + $0x1c8] sm:$0xff] %v415
                  %v417 = vld [vmem:[%s299 + $0x720] sm:$0xff]
                  %418 = vst [vmem:[%s300 + $0x1d0] sm:$0xff] %v417
                  %v419 = vld [vmem:[%s299 + $0x730] sm:$0xff]
                  %420 = vst [vmem:[%s300 + $0x1d8] sm:$0xff] %v419
                  %v421 = vld [vmem:[%s299 + $0x740] sm:$0xff]
                  %422 = vst [vmem:[%s300 + $0x1e0] sm:$0xff] %v421
                  %v423 = vld [vmem:[%s299 + $0x750] sm:$0xff]
                  %424 = vst [vmem:[%s300 + $0x1e8] sm:$0xff] %v423
                  %v425 = vld [vmem:[%s299 + $0x760] sm:$0xff]
                  %426 = vst [vmem:[%s300 + $0x1f0] sm:$0xff] %v425
                  %v427 = vld [vmem:[%s299 + $0x770] sm:$0xff]
                  %428 = vst [vmem:[%s300 + $0x1f8] sm:$0xff] %v427
                $region48: #{downsample.1} parent=42 // loop_footer
                  %s298 = sadd.s32 1, %s294
                $region49: #{downsample.1} parent=42 // loop_footer_branch
                  %293 = sbr.rel target = $region45
                $region50: #{downsample.1} parent=42 // loop_exit
                  _
              $region43: #{downsample.1} parent=27 // pred_fallthru
                _
              // Predicated region
              $region51: #{downsample.1} parent=27 // pred_check
                _
              $region52: #{downsample.1} parent=27 // pred_check_branch
                %430 = sbr.rel target = $region54
              $region53: #{downsample.1} parent=27 // pred_region
                _
              $region54: #{downsample.1} parent=27 // pred_fallthru
                _
            $region28: #{downsample.1} parent=23 // pred_fallthru
              _
            // Predicated region
            $region29: #{downsample.1} parent=23 // pred_check
              _
            $region30: #{downsample.1} parent=23 // pred_check_branch
              %152 = sbr.rel target = $region32
            $region31: #{downsample.1} parent=23 // pred_region
              %s154 = ssub.s32 256, 1
              loop: start=0, step=1, limit=1
              $region33: #{downsample.1} parent=31 // loop_pre_header
                _
              $region34: #{downsample.1} parent=31 // loop_header
                %s156 = sphi 0, %s160
                %p157 = scmp.ge.s32.totalorder %s156, 1
                %s161 = sphi %s146, %s146
                %s162 = sphi %s139, %s139
              $region35: #{downsample.1} parent=31 // loop_header_branch
                %159 = sbr.rel (%p157) target = $region39
              $region36: #{downsample.1} parent=31 // loop_body
                %v163 = vld [vmem:[%s161] sm:%s154]
                %164 = vst [vmem:[%s162] sm:%s154] %v163
                %v165 = vld [vmem:[%s161 + $0x10] sm:%s154]
                %166 = vst [vmem:[%s162 + $0x8] sm:%s154] %v165
                %v167 = vld [vmem:[%s161 + $0x20] sm:%s154]
                %168 = vst [vmem:[%s162 + $0x10] sm:%s154] %v167
                %v169 = vld [vmem:[%s161 + $0x30] sm:%s154]
                %170 = vst [vmem:[%s162 + $0x18] sm:%s154] %v169
                %v171 = vld [vmem:[%s161 + $0x40] sm:%s154]
                %172 = vst [vmem:[%s162 + $0x20] sm:%s154] %v171
                %v173 = vld [vmem:[%s161 + $0x50] sm:%s154]
                %174 = vst [vmem:[%s162 + $0x28] sm:%s154] %v173
                %v175 = vld [vmem:[%s161 + $0x60] sm:%s154]
                %176 = vst [vmem:[%s162 + $0x30] sm:%s154] %v175
                %v177 = vld [vmem:[%s161 + $0x70] sm:%s154]
                %178 = vst [vmem:[%s162 + $0x38] sm:%s154] %v177
                %v179 = vld [vmem:[%s161 + $0x100] sm:%s154]
                %180 = vst [vmem:[%s162 + $0x40] sm:%s154] %v179
                %v181 = vld [vmem:[%s161 + $0x110] sm:%s154]
                %182 = vst [vmem:[%s162 + $0x48] sm:%s154] %v181
                %v183 = vld [vmem:[%s161 + $0x120] sm:%s154]
                %184 = vst [vmem:[%s162 + $0x50] sm:%s154] %v183
                %v185 = vld [vmem:[%s161 + $0x130] sm:%s154]
                %186 = vst [vmem:[%s162 + $0x58] sm:%s154] %v185
                %v187 = vld [vmem:[%s161 + $0x140] sm:%s154]
                %188 = vst [vmem:[%s162 + $0x60] sm:%s154] %v187
                %v189 = vld [vmem:[%s161 + $0x150] sm:%s154]
                %190 = vst [vmem:[%s162 + $0x68] sm:%s154] %v189
                %v191 = vld [vmem:[%s161 + $0x160] sm:%s154]
                %192 = vst [vmem:[%s162 + $0x70] sm:%s154] %v191
                %v193 = vld [vmem:[%s161 + $0x170] sm:%s154]
                %194 = vst [vmem:[%s162 + $0x78] sm:%s154] %v193
                %v195 = vld [vmem:[%s161 + $0x200] sm:%s154]
                %196 = vst [vmem:[%s162 + $0x80] sm:%s154] %v195
                %v197 = vld [vmem:[%s161 + $0x210] sm:%s154]
                %198 = vst [vmem:[%s162 + $0x88] sm:%s154] %v197
                %v199 = vld [vmem:[%s161 + $0x220] sm:%s154]
                %200 = vst [vmem:[%s162 + $0x90] sm:%s154] %v199
                %v201 = vld [vmem:[%s161 + $0x230] sm:%s154]
                %202 = vst [vmem:[%s162 + $0x98] sm:%s154] %v201
                %v203 = vld [vmem:[%s161 + $0x240] sm:%s154]
                %204 = vst [vmem:[%s162 + $0xa0] sm:%s154] %v203
                %v205 = vld [vmem:[%s161 + $0x250] sm:%s154]
                %206 = vst [vmem:[%s162 + $0xa8] sm:%s154] %v205
                %v207 = vld [vmem:[%s161 + $0x260] sm:%s154]
                %208 = vst [vmem:[%s162 + $0xb0] sm:%s154] %v207
                %v209 = vld [vmem:[%s161 + $0x270] sm:%s154]
                %210 = vst [vmem:[%s162 + $0xb8] sm:%s154] %v209
                %v211 = vld [vmem:[%s161 + $0x300] sm:%s154]
                %212 = vst [vmem:[%s162 + $0xc0] sm:%s154] %v211
                %v213 = vld [vmem:[%s161 + $0x310] sm:%s154]
                %214 = vst [vmem:[%s162 + $0xc8] sm:%s154] %v213
                %v215 = vld [vmem:[%s161 + $0x320] sm:%s154]
                %216 = vst [vmem:[%s162 + $0xd0] sm:%s154] %v215
                %v217 = vld [vmem:[%s161 + $0x330] sm:%s154]
                %218 = vst [vmem:[%s162 + $0xd8] sm:%s154] %v217
                %v219 = vld [vmem:[%s161 + $0x340] sm:%s154]
                %220 = vst [vmem:[%s162 + $0xe0] sm:%s154] %v219
                %v221 = vld [vmem:[%s161 + $0x350] sm:%s154]
                %222 = vst [vmem:[%s162 + $0xe8] sm:%s154] %v221
                %v223 = vld [vmem:[%s161 + $0x360] sm:%s154]
                %224 = vst [vmem:[%s162 + $0xf0] sm:%s154] %v223
                %v225 = vld [vmem:[%s161 + $0x370] sm:%s154]
                %226 = vst [vmem:[%s162 + $0xf8] sm:%s154] %v225
                %v227 = vld [vmem:[%s161 + $0x400] sm:%s154]
                %228 = vst [vmem:[%s162 + $0x100] sm:%s154] %v227
                %v229 = vld [vmem:[%s161 + $0x410] sm:%s154]
                %230 = vst [vmem:[%s162 + $0x108] sm:%s154] %v229
                %v231 = vld [vmem:[%s161 + $0x420] sm:%s154]
                %232 = vst [vmem:[%s162 + $0x110] sm:%s154] %v231
                %v233 = vld [vmem:[%s161 + $0x430] sm:%s154]
                %234 = vst [vmem:[%s162 + $0x118] sm:%s154] %v233
                %v235 = vld [vmem:[%s161 + $0x440] sm:%s154]
                %236 = vst [vmem:[%s162 + $0x120] sm:%s154] %v235
                %v237 = vld [vmem:[%s161 + $0x450] sm:%s154]
                %238 = vst [vmem:[%s162 + $0x128] sm:%s154] %v237
                %v239 = vld [vmem:[%s161 + $0x460] sm:%s154]
                %240 = vst [vmem:[%s162 + $0x130] sm:%s154] %v239
                %v241 = vld [vmem:[%s161 + $0x470] sm:%s154]
                %242 = vst [vmem:[%s162 + $0x138] sm:%s154] %v241
                %v243 = vld [vmem:[%s161 + $0x500] sm:%s154]
                %244 = vst [vmem:[%s162 + $0x140] sm:%s154] %v243
                %v245 = vld [vmem:[%s161 + $0x510] sm:%s154]
                %246 = vst [vmem:[%s162 + $0x148] sm:%s154] %v245
                %v247 = vld [vmem:[%s161 + $0x520] sm:%s154]
                %248 = vst [vmem:[%s162 + $0x150] sm:%s154] %v247
                %v249 = vld [vmem:[%s161 + $0x530] sm:%s154]
                %250 = vst [vmem:[%s162 + $0x158] sm:%s154] %v249
                %v251 = vld [vmem:[%s161 + $0x540] sm:%s154]
                %252 = vst [vmem:[%s162 + $0x160] sm:%s154] %v251
                %v253 = vld [vmem:[%s161 + $0x550] sm:%s154]
                %254 = vst [vmem:[%s162 + $0x168] sm:%s154] %v253
                %v255 = vld [vmem:[%s161 + $0x560] sm:%s154]
                %256 = vst [vmem:[%s162 + $0x170] sm:%s154] %v255
                %v257 = vld [vmem:[%s161 + $0x570] sm:%s154]
                %258 = vst [vmem:[%s162 + $0x178] sm:%s154] %v257
                %v259 = vld [vmem:[%s161 + $0x600] sm:%s154]
                %260 = vst [vmem:[%s162 + $0x180] sm:%s154] %v259
                %v261 = vld [vmem:[%s161 + $0x610] sm:%s154]
                %262 = vst [vmem:[%s162 + $0x188] sm:%s154] %v261
                %v263 = vld [vmem:[%s161 + $0x620] sm:%s154]
                %264 = vst [vmem:[%s162 + $0x190] sm:%s154] %v263
                %v265 = vld [vmem:[%s161 + $0x630] sm:%s154]
                %266 = vst [vmem:[%s162 + $0x198] sm:%s154] %v265
                %v267 = vld [vmem:[%s161 + $0x640] sm:%s154]
                %268 = vst [vmem:[%s162 + $0x1a0] sm:%s154] %v267
                %v269 = vld [vmem:[%s161 + $0x650] sm:%s154]
                %270 = vst [vmem:[%s162 + $0x1a8] sm:%s154] %v269
                %v271 = vld [vmem:[%s161 + $0x660] sm:%s154]
                %272 = vst [vmem:[%s162 + $0x1b0] sm:%s154] %v271
                %v273 = vld [vmem:[%s161 + $0x670] sm:%s154]
                %274 = vst [vmem:[%s162 + $0x1b8] sm:%s154] %v273
                %v275 = vld [vmem:[%s161 + $0x700] sm:%s154]
                %276 = vst [vmem:[%s162 + $0x1c0] sm:%s154] %v275
                %v277 = vld [vmem:[%s161 + $0x710] sm:%s154]
                %278 = vst [vmem:[%s162 + $0x1c8] sm:%s154] %v277
                %v279 = vld [vmem:[%s161 + $0x720] sm:%s154]
                %280 = vst [vmem:[%s162 + $0x1d0] sm:%s154] %v279
                %v281 = vld [vmem:[%s161 + $0x730] sm:%s154]
                %282 = vst [vmem:[%s162 + $0x1d8] sm:%s154] %v281
                %v283 = vld [vmem:[%s161 + $0x740] sm:%s154]
                %284 = vst [vmem:[%s162 + $0x1e0] sm:%s154] %v283
                %v285 = vld [vmem:[%s161 + $0x750] sm:%s154]
                %286 = vst [vmem:[%s162 + $0x1e8] sm:%s154] %v285
                %v287 = vld [vmem:[%s161 + $0x760] sm:%s154]
                %288 = vst [vmem:[%s162 + $0x1f0] sm:%s154] %v287
                %v289 = vld [vmem:[%s161 + $0x770] sm:%s154]
                %290 = vst [vmem:[%s162 + $0x1f8] sm:%s154] %v289
              $region37: #{downsample.1} parent=31 // loop_footer
                %s160 = sadd.s32 1, %s156
              $region38: #{downsample.1} parent=31 // loop_footer_branch
                %155 = sbr.rel target = $region34
              $region39: #{downsample.1} parent=31 // loop_exit
                _
            $region32: #{downsample.1} parent=23 // pred_fallthru
              _
          $region24: #{downsample.1} parent=19 // pred_fallthru
            _
          %431 = vnop
        $region20: #{downsample.1} parent=15 // pred_fallthru
          _
        // Predicated region
        $region55: #{downsample.1} parent=15 // pred_check
          %p432 = pneg %p82
        $region56: #{downsample.1} parent=15 // pred_check_branch
          %434 = sbr.rel (%p432) target = $region58
        $region57: #{downsample.1} parent=15 // pred_region
          %p435 = scmp.lt.s32.totalorder %s19, 1
          %s436 = scalar_select %p435, %s19, 1
          %p437 = scmp.lt.s32.totalorder %s20, 1
          %s438 = scalar_select %p437, %s20, 1
          %s439 = smul.addr %s438, 8
          %s440 = smul.addr %s436, 16
          %s441 = sadd.s32 %s439, %s440
          %s442 = smul.addr %s441, 8
          %s443 = scalar_lea.vmem %s1, %s442
        $region58: #{downsample.1} parent=15 // pred_fallthru
          _
      $region16: #{downsample.1} parent=5 // pred_fallthru
        _
      %p444 = scmp.le.s32.totalorder 1, %s11
      %p445 = scmp.lt.s32.totalorder %s11, 9
      %p446 = pnand %p444, %p445
      %p447 = pneg %p446
      // Predicated region
      $region59: #{downsample.1} parent=5 // pred_check
        _
      $region60: #{downsample.1} parent=5 // pred_check_branch
        %449 = sbr.rel (%p446) target = $region62
      $region61: #{downsample.1} parent=5 // pred_region
        %s450 = ssub.s32 %s11, 1
        %s451 = sand.u32 %s47, 1
        %s452 = sand.u32 %s47, 1
        %s453 = smul.addr %s452, 512
        %s454 = scalar_lea.vmem [#allocation3], %s453
        // Predicated region
        $region63: #{downsample.1} parent=61 // pred_check
          %p455 = pneg %p60
        $region64: #{downsample.1} parent=61 // pred_check_branch
          %457 = sbr.rel (%p455) target = $region66
        $region65: #{downsample.1} parent=61 // pred_region
          _
        $region66: #{downsample.1} parent=61 // pred_fallthru
          _
        %s458 = sand.u32 %s47, 1
        %s459 = sand.u32 %s47, 1
        %s460 = smul.addr %s459, 512
        %s461 = scalar_lea.vmem [#allocation3], %s460
        %p462 = pneg %p60
        %p463 = pneg %p57
        %p464 = scmp.lt.s32.totalorder %s22, 1
        %s465 = scalar_select %p464, %s22, 1
        %p466 = scmp.lt.s32.totalorder %s23, 1
        %s467 = scalar_select %p466, %s23, 1
        %s468 = smul.addr %s467, 8
        %s469 = smul.addr %s465, 16
        %s470 = sadd.s32 %s468, %s469
        %s471 = smul.addr %s470, 8
        %s472 = scalar_lea.vmem %s1, %s471
        %p473 = pneg %p88
        %p474 = pneg %p85
        %p475 = pneg %p114
        %p476 = pneg %p111
        %s477 = sand.u32 %s101, 1
        %s478 = scalar_lea.sflag [#allocation5], %s477
        %s479 = sand.u32 %s101, 1
        %s480 = smul.addr %s479, 512
        %s481 = scalar_lea.vmem [#allocation4], %s480
        %s482 = smul.u32 8, %s21
        %p483 = scmp.lt.s32.totalorder %s22, 1
        %s484 = scalar_select %p483, %s22, 1
        %p485 = scmp.lt.s32.totalorder %s23, 1
        %s486 = scalar_select %p485, %s23, 1
        %s487 = smul.addr %s486, 8
        %s488 = smul.addr %s484, 16
        %s489 = sadd.s32 %s487, %s488
        %s490 = smul.addr %s489, 8
        %s491 = scalar_lea.vmem %s1, %s490
        %s492 = smul.u32 64, %s21
        %p493 = scmp.eq.s32.totalorder %s22, 0
        %p494 = scmp.eq.s32.totalorder %s23, 0
        %p495 = pnand %p493, %p494
        %p496 = pneg %p495
        // Predicated region
        $region67: #{downsample.1} parent=61 // pred_check
          _
        $region68: #{downsample.1} parent=61 // pred_check_branch
          %498 = sbr.rel (%p495) target = $region70
        $region69: #{downsample.1} parent=61 // pred_region
          %499 = vst [vmem:[#allocation2] sm:$0xff] 0.0
          %500 = vst [vmem:[#allocation2 + $0x8] sm:$0xff] 0.0
          %501 = vst [vmem:[#allocation2 + $0x10] sm:$0xff] 0.0
          %502 = vst [vmem:[#allocation2 + $0x18] sm:$0xff] 0.0
          %503 = vst [vmem:[#allocation2 + $0x20] sm:$0xff] 0.0
          %504 = vst [vmem:[#allocation2 + $0x28] sm:$0xff] 0.0
          %505 = vst [vmem:[#allocation2 + $0x30] sm:$0xff] 0.0
          %506 = vst [vmem:[#allocation2 + $0x38] sm:$0xff] 0.0
          %507 = vst [vmem:[#allocation2 + $0x40] sm:$0xff] 0.0
          %508 = vst [vmem:[#allocation2 + $0x48] sm:$0xff] 0.0
          %509 = vst [vmem:[#allocation2 + $0x50] sm:$0xff] 0.0
          %510 = vst [vmem:[#allocation2 + $0x58] sm:$0xff] 0.0
          %511 = vst [vmem:[#allocation2 + $0x60] sm:$0xff] 0.0
          %512 = vst [vmem:[#allocation2 + $0x68] sm:$0xff] 0.0
          %513 = vst [vmem:[#allocation2 + $0x70] sm:$0xff] 0.0
          %514 = vst [vmem:[#allocation2 + $0x78] sm:$0xff] 0.0
          %515 = vst [vmem:[#allocation2 + $0x80] sm:$0xff] 0.0
          %516 = vst [vmem:[#allocation2 + $0x88] sm:$0xff] 0.0
          %517 = vst [vmem:[#allocation2 + $0x90] sm:$0xff] 0.0
          %518 = vst [vmem:[#allocation2 + $0x98] sm:$0xff] 0.0
          %519 = vst [vmem:[#allocation2 + $0xa0] sm:$0xff] 0.0
          %520 = vst [vmem:[#allocation2 + $0xa8] sm:$0xff] 0.0
          %521 = vst [vmem:[#allocation2 + $0xb0] sm:$0xff] 0.0
          %522 = vst [vmem:[#allocation2 + $0xb8] sm:$0xff] 0.0
          %523 = vst [vmem:[#allocation2 + $0xc0] sm:$0xff] 0.0
          %524 = vst [vmem:[#allocation2 + $0xc8] sm:$0xff] 0.0
          %525 = vst [vmem:[#allocation2 + $0xd0] sm:$0xff] 0.0
          %526 = vst [vmem:[#allocation2 + $0xd8] sm:$0xff] 0.0
          %527 = vst [vmem:[#allocation2 + $0xe0] sm:$0xff] 0.0
          %528 = vst [vmem:[#allocation2 + $0xe8] sm:$0xff] 0.0
          %529 = vst [vmem:[#allocation2 + $0xf0] sm:$0xff] 0.0
          %530 = vst [vmem:[#allocation2 + $0xf8] sm:$0xff] 0.0
          %531 = vst [vmem:[#allocation2 + $0x100] sm:$0xff] 0.0
          %532 = vst [vmem:[#allocation2 + $0x108] sm:$0xff] 0.0
          %533 = vst [vmem:[#allocation2 + $0x110] sm:$0xff] 0.0
          %534 = vst [vmem:[#allocation2 + $0x118] sm:$0xff] 0.0
          %535 = vst [vmem:[#allocation2 + $0x120] sm:$0xff] 0.0
          %536 = vst [vmem:[#allocation2 + $0x128] sm:$0xff] 0.0
          %537 = vst [vmem:[#allocation2 + $0x130] sm:$0xff] 0.0
          %538 = vst [vmem:[#allocation2 + $0x138] sm:$0xff] 0.0
          %539 = vst [vmem:[#allocation2 + $0x140] sm:$0xff] 0.0
          %540 = vst [vmem:[#allocation2 + $0x148] sm:$0xff] 0.0
          %541 = vst [vmem:[#allocation2 + $0x150] sm:$0xff] 0.0
          %542 = vst [vmem:[#allocation2 + $0x158] sm:$0xff] 0.0
          %543 = vst [vmem:[#allocation2 + $0x160] sm:$0xff] 0.0
          %544 = vst [vmem:[#allocation2 + $0x168] sm:$0xff] 0.0
          %545 = vst [vmem:[#allocation2 + $0x170] sm:$0xff] 0.0
          %546 = vst [vmem:[#allocation2 + $0x178] sm:$0xff] 0.0
          %547 = vst [vmem:[#allocation2 + $0x180] sm:$0xff] 0.0
          %548 = vst [vmem:[#allocation2 + $0x188] sm:$0xff] 0.0
          %549 = vst [vmem:[#allocation2 + $0x190] sm:$0xff] 0.0
          %550 = vst [vmem:[#allocation2 + $0x198] sm:$0xff] 0.0
          %551 = vst [vmem:[#allocation2 + $0x1a0] sm:$0xff] 0.0
          %552 = vst [vmem:[#allocation2 + $0x1a8] sm:$0xff] 0.0
          %553 = vst [vmem:[#allocation2 + $0x1b0] sm:$0xff] 0.0
          %554 = vst [vmem:[#allocation2 + $0x1b8] sm:$0xff] 0.0
          %555 = vst [vmem:[#allocation2 + $0x1c0] sm:$0xff] 0.0
          %556 = vst [vmem:[#allocation2 + $0x1c8] sm:$0xff] 0.0
          %557 = vst [vmem:[#allocation2 + $0x1d0] sm:$0xff] 0.0
          %558 = vst [vmem:[#allocation2 + $0x1d8] sm:$0xff] 0.0
          %559 = vst [vmem:[#allocation2 + $0x1e0] sm:$0xff] 0.0
          %560 = vst [vmem:[#allocation2 + $0x1e8] sm:$0xff] 0.0
          %561 = vst [vmem:[#allocation2 + $0x1f0] sm:$0xff] 0.0
          %562 = vst [vmem:[#allocation2 + $0x1f8] sm:$0xff] 0.0
        $region70: #{downsample.1} parent=61 // pred_fallthru
          _
        %v563 = vld [vmem:[%s454] sm:$0xff]
        %v564 = vld [vmem:[%s454 + $0x8] sm:$0xff]
        %v565 = vld [vmem:[%s454 + $0x10] sm:$0xff]
        %v566 = vld [vmem:[%s454 + $0x18] sm:$0xff]
        %v567 = vld [vmem:[%s454 + $0x20] sm:$0xff]
        %v568 = vld [vmem:[%s454 + $0x28] sm:$0xff]
        %v569 = vld [vmem:[%s454 + $0x30] sm:$0xff]
        %v570 = vld [vmem:[%s454 + $0x38] sm:$0xff]
        %v571 = vld [vmem:[%s454 + $0x40] sm:$0xff]
        %v572 = vld [vmem:[%s454 + $0x48] sm:$0xff]
        %v573 = vld [vmem:[%s454 + $0x50] sm:$0xff]
        %v574 = vld [vmem:[%s454 + $0x58] sm:$0xff]
        %v575 = vld [vmem:[%s454 + $0x60] sm:$0xff]
        %v576 = vld [vmem:[%s454 + $0x68] sm:$0xff]
        %v577 = vld [vmem:[%s454 + $0x70] sm:$0xff]
        %v578 = vld [vmem:[%s454 + $0x78] sm:$0xff]
        %v579 = vld [vmem:[%s454 + $0x80] sm:$0xff]
        %v580 = vld [vmem:[%s454 + $0x88] sm:$0xff]
        %v581 = vld [vmem:[%s454 + $0x90] sm:$0xff]
        %v582 = vld [vmem:[%s454 + $0x98] sm:$0xff]
        %v583 = vld [vmem:[%s454 + $0xa0] sm:$0xff]
        %v584 = vld [vmem:[%s454 + $0xa8] sm:$0xff]
        %v585 = vld [vmem:[%s454 + $0xb0] sm:$0xff]
        %v586 = vld [vmem:[%s454 + $0xb8] sm:$0xff]
        %v587 = vld [vmem:[%s454 + $0xc0] sm:$0xff]
        %v588 = vld [vmem:[%s454 + $0xc8] sm:$0xff]
        %v589 = vld [vmem:[%s454 + $0xd0] sm:$0xff]
        %v590 = vld [vmem:[%s454 + $0xd8] sm:$0xff]
        %v591 = vld [vmem:[%s454 + $0xe0] sm:$0xff]
        %v592 = vld [vmem:[%s454 + $0xe8] sm:$0xff]
        %v593 = vld [vmem:[%s454 + $0xf0] sm:$0xff]
        %v594 = vld [vmem:[%s454 + $0xf8] sm:$0xff]
        %v595 = vld [vmem:[%s454 + $0x100] sm:$0xff]
        %v596 = vld [vmem:[%s454 + $0x108] sm:$0xff]
        %v597 = vld [vmem:[%s454 + $0x110] sm:$0xff]
        %v598 = vld [vmem:[%s454 + $0x118] sm:$0xff]
        %v599 = vld [vmem:[%s454 + $0x120] sm:$0xff]
        %v600 = vld [vmem:[%s454 + $0x128] sm:$0xff]
        %v601 = vld [vmem:[%s454 + $0x130] sm:$0xff]
        %v602 = vld [vmem:[%s454 + $0x138] sm:$0xff]
        %v603 = vld [vmem:[%s454 + $0x140] sm:$0xff]
        %v604 = vld [vmem:[%s454 + $0x148] sm:$0xff]
        %v605 = vld [vmem:[%s454 + $0x150] sm:$0xff]
        %v606 = vld [vmem:[%s454 + $0x158] sm:$0xff]
        %v607 = vld [vmem:[%s454 + $0x160] sm:$0xff]
        %v608 = vld [vmem:[%s454 + $0x168] sm:$0xff]
        %v609 = vld [vmem:[%s454 + $0x170] sm:$0xff]
        %v610 = vld [vmem:[%s454 + $0x178] sm:$0xff]
        %v611 = vld [vmem:[%s454 + $0x180] sm:$0xff]
        %v612 = vld [vmem:[%s454 + $0x188] sm:$0xff]
        %v613 = vld [vmem:[%s454 + $0x190] sm:$0xff]
        %v614 = vld [vmem:[%s454 + $0x198] sm:$0xff]
        %v615 = vld [vmem:[%s454 + $0x1a0] sm:$0xff]
        %v616 = vld [vmem:[%s454 + $0x1a8] sm:$0xff]
        %v617 = vld [vmem:[%s454 + $0x1b0] sm:$0xff]
        %v618 = vld [vmem:[%s454 + $0x1b8] sm:$0xff]
        %v619 = vld [vmem:[%s454 + $0x1c0] sm:$0xff]
        %v620 = vld [vmem:[%s454 + $0x1c8] sm:$0xff]
        %v621 = vld [vmem:[%s454 + $0x1d0] sm:$0xff]
        %v622 = vld [vmem:[%s454 + $0x1d8] sm:$0xff]
        %v623 = vld [vmem:[%s454 + $0x1e0] sm:$0xff]
        %v624 = vld [vmem:[%s454 + $0x1e8] sm:$0xff]
        %v625 = vld [vmem:[%s454 + $0x1f0] sm:$0xff]
        %v626 = vld [vmem:[%s454 + $0x1f8] sm:$0xff]
        %v627 = vld [vmem:[#allocation2] sm:$0xff]
        %v628 = vld [vmem:[#allocation2 + $0x8] sm:$0xff]
        %v629 = vld [vmem:[#allocation2 + $0x10] sm:$0xff]
        %v630 = vld [vmem:[#allocation2 + $0x18] sm:$0xff]
        %v631 = vld [vmem:[#allocation2 + $0x20] sm:$0xff]
        %v632 = vld [vmem:[#allocation2 + $0x28] sm:$0xff]
        %v633 = vld [vmem:[#allocation2 + $0x30] sm:$0xff]
        %v634 = vld [vmem:[#allocation2 + $0x38] sm:$0xff]
        %v635 = vld [vmem:[#allocation2 + $0x40] sm:$0xff]
        %v636 = vld [vmem:[#allocation2 + $0x48] sm:$0xff]
        %v637 = vld [vmem:[#allocation2 + $0x50] sm:$0xff]
        %v638 = vld [vmem:[#allocation2 + $0x58] sm:$0xff]
        %v639 = vld [vmem:[#allocation2 + $0x60] sm:$0xff]
        %v640 = vld [vmem:[#allocation2 + $0x68] sm:$0xff]
        %v641 = vld [vmem:[#allocation2 + $0x70] sm:$0xff]
        %v642 = vld [vmem:[#allocation2 + $0x78] sm:$0xff]
        %v643 = vld [vmem:[#allocation2 + $0x80] sm:$0xff]
        %v644 = vld [vmem:[#allocation2 + $0x88] sm:$0xff]
        %v645 = vld [vmem:[#allocation2 + $0x90] sm:$0xff]
        %v646 = vld [vmem:[#allocation2 + $0x98] sm:$0xff]
        %v647 = vld [vmem:[#allocation2 + $0xa0] sm:$0xff]
        %v648 = vld [vmem:[#allocation2 + $0xa8] sm:$0xff]
        %v649 = vld [vmem:[#allocation2 + $0xb0] sm:$0xff]
        %v650 = vld [vmem:[#allocation2 + $0xb8] sm:$0xff]
        %v651 = vld [vmem:[#allocation2 + $0xc0] sm:$0xff]
        %v652 = vld [vmem:[#allocation2 + $0xc8] sm:$0xff]
        %v653 = vld [vmem:[#allocation2 + $0xd0] sm:$0xff]
        %v654 = vld [vmem:[#allocation2 + $0xd8] sm:$0xff]
        %v655 = vld [vmem:[#allocation2 + $0xe0] sm:$0xff]
        %v656 = vld [vmem:[#allocation2 + $0xe8] sm:$0xff]
        %v657 = vld [vmem:[#allocation2 + $0xf0] sm:$0xff]
        %v658 = vld [vmem:[#allocation2 + $0xf8] sm:$0xff]
        %v659 = vld [vmem:[#allocation2 + $0x100] sm:$0xff]
        %v660 = vld [vmem:[#allocation2 + $0x108] sm:$0xff]
        %v661 = vld [vmem:[#allocation2 + $0x110] sm:$0xff]
        %v662 = vld [vmem:[#allocation2 + $0x118] sm:$0xff]
        %v663 = vld [vmem:[#allocation2 + $0x120] sm:$0xff]
        %v664 = vld [vmem:[#allocation2 + $0x128] sm:$0xff]
        %v665 = vld [vmem:[#allocation2 + $0x130] sm:$0xff]
        %v666 = vld [vmem:[#allocation2 + $0x138] sm:$0xff]
        %v667 = vld [vmem:[#allocation2 + $0x140] sm:$0xff]
        %v668 = vld [vmem:[#allocation2 + $0x148] sm:$0xff]
        %v669 = vld [vmem:[#allocation2 + $0x150] sm:$0xff]
        %v670 = vld [vmem:[#allocation2 + $0x158] sm:$0xff]
        %v671 = vld [vmem:[#allocation2 + $0x160] sm:$0xff]
        %v672 = vld [vmem:[#allocation2 + $0x168] sm:$0xff]
        %v673 = vld [vmem:[#allocation2 + $0x170] sm:$0xff]
        %v674 = vld [vmem:[#allocation2 + $0x178] sm:$0xff]
        %v675 = vld [vmem:[#allocation2 + $0x180] sm:$0xff]
        %v676 = vld [vmem:[#allocation2 + $0x188] sm:$0xff]
        %v677 = vld [vmem:[#allocation2 + $0x190] sm:$0xff]
        %v678 = vld [vmem:[#allocation2 + $0x198] sm:$0xff]
        %v679 = vld [vmem:[#allocation2 + $0x1a0] sm:$0xff]
        %v680 = vld [vmem:[#allocation2 + $0x1a8] sm:$0xff]
        %v681 = vld [vmem:[#allocation2 + $0x1b0] sm:$0xff]
        %v682 = vld [vmem:[#allocation2 + $0x1b8] sm:$0xff]
        %v683 = vld [vmem:[#allocation2 + $0x1c0] sm:$0xff]
        %v684 = vld [vmem:[#allocation2 + $0x1c8] sm:$0xff]
        %v685 = vld [vmem:[#allocation2 + $0x1d0] sm:$0xff]
        %v686 = vld [vmem:[#allocation2 + $0x1d8] sm:$0xff]
        %v687 = vld [vmem:[#allocation2 + $0x1e0] sm:$0xff]
        %v688 = vld [vmem:[#allocation2 + $0x1e8] sm:$0xff]
        %v689 = vld [vmem:[#allocation2 + $0x1f0] sm:$0xff]
        %v690 = vld [vmem:[#allocation2 + $0x1f8] sm:$0xff]
        %v691 = vld [vmem:[%s491] sm:$0xff]
        %v692 = vld [vmem:[%s491 + $0x8] sm:$0xff]
        %v693 = vld [vmem:[%s491 + $0x10] sm:$0xff]
        %v694 = vld [vmem:[%s491 + $0x18] sm:$0xff]
        %v695 = vld [vmem:[%s491 + $0x20] sm:$0xff]
        %v696 = vld [vmem:[%s491 + $0x28] sm:$0xff]
        %v697 = vld [vmem:[%s491 + $0x30] sm:$0xff]
        %v698 = vld [vmem:[%s491 + $0x38] sm:$0xff]
        %vm699 = vcmask 523264
        %v701 = vsel %vm699, %v563, 0
        %v704 = vsel %vm699, %v564, 0
        %v707 = vsel %vm699, %v565, 0
        %v710 = vsel %vm699, %v566, 0
        %v713 = vsel %vm699, %v567, 0
        %v716 = vsel %vm699, %v568, 0
        %v719 = vsel %vm699, %v569, 0
        %v722 = vsel %vm699, %v570, 0
        %v725 = vsel %vm699, %v571, 0
        %v728 = vsel %vm699, %v572, 0
        %v731 = vsel %vm699, %v573, 0
        %v734 = vsel %vm699, %v574, 0
        %v737 = vsel %vm699, %v575, 0
        %v740 = vsel %vm699, %v576, 0
        %v743 = vsel %vm699, %v577, 0
        %v746 = vsel %vm699, %v578, 0
        %v749 = vsel %vm699, %v579, 0
        %v752 = vsel %vm699, %v580, 0
        %v755 = vsel %vm699, %v581, 0
        %v758 = vsel %vm699, %v582, 0
        %v761 = vsel %vm699, %v583, 0
        %v764 = vsel %vm699, %v584, 0
        %v767 = vsel %vm699, %v585, 0
        %v770 = vsel %vm699, %v586, 0
        %v773 = vsel %vm699, %v587, 0
        %v776 = vsel %vm699, %v588, 0
        %v779 = vsel %vm699, %v589, 0
        %v782 = vsel %vm699, %v590, 0
        %v785 = vsel %vm699, %v591, 0
        %v788 = vsel %vm699, %v592, 0
        %v791 = vsel %vm699, %v593, 0
        %v794 = vsel %vm699, %v594, 0
        %v797 = vsel %vm699, %v595, 0
        %v800 = vsel %vm699, %v596, 0
        %v803 = vsel %vm699, %v597, 0
        %v806 = vsel %vm699, %v598, 0
        %v809 = vsel %vm699, %v599, 0
        %v812 = vsel %vm699, %v600, 0
        %v815 = vsel %vm699, %v601, 0
        %v818 = vsel %vm699, %v602, 0
        %v821 = vsel %vm699, %v603, 0
        %v824 = vsel %vm699, %v604, 0
        %v827 = vsel %vm699, %v605, 0
        %v830 = vsel %vm699, %v606, 0
        %v833 = vsel %vm699, %v607, 0
        %v836 = vsel %vm699, %v608, 0
        %v839 = vsel %vm699, %v609, 0
        %v842 = vsel %vm699, %v610, 0
        %v845 = vsel %vm699, %v611, 0
        %v848 = vsel %vm699, %v612, 0
        %v851 = vsel %vm699, %v613, 0
        %v854 = vsel %vm699, %v614, 0
        %v857 = vsel %vm699, %v615, 0
        %v860 = vsel %vm699, %v616, 0
        %v863 = vsel %vm699, %v617, 0
        %v866 = vsel %vm699, %v618, 0
        %v869 = vsel %vm699, %v619, 0
        %v872 = vsel %vm699, %v620, 0
        %v875 = vsel %vm699, %v621, 0
        %v878 = vsel %vm699, %v622, 0
        %v881 = vsel %vm699, %v623, 0
        %v884 = vsel %vm699, %v624, 0
        %v887 = vsel %vm699, %v625, 0
        %v890 = vsel %vm699, %v626, 0
        %892 = vmatpush.msra.mxu0 0.0
        %893 = vmatpush.msra.mxu0 0.0
        %894 = vmatpush.msra.mxu0 0.0
        %895 = vmatpush.msra.mxu0 0.0
        %896 = vmatpush.msra.mxu0 0.0
        %897 = vmatpush.msra.mxu0 0.0
        %898 = vmatpush.msra.mxu0 0.0
        %899 = vmatpush.msra.mxu0 0.0
        %900 = vmatpush.msra.mxu0 %v698
        %901 = vmatpush.msra.mxu0 %v697
        %902 = vmatpush.msra.mxu0 %v696
        %903 = vmatpush.msra.mxu0 %v695
        %904 = vmatpush.msra.mxu0 %v694
        %905 = vmatpush.msra.mxu0 %v693
        %906 = vmatpush.msra.mxu0 %v692
        %907 = vmatpush.msra.mxu0 %v691
        %908 = vmatmul.f32.gmra.mxu0 %v701
        %v909 = vpop.f32.mrf.mxu0
        %v910 = vadd.f32 0.0, %v909
        %911 = vmatmul.f32.gmra.mxu0 %v704
        %v912 = vpop.f32.mrf.mxu0
        %v913 = vadd.f32 0.0, %v912
        %914 = vmatmul.f32.gmra.mxu0 %v707
        %v915 = vpop.f32.mrf.mxu0
        %v916 = vadd.f32 0.0, %v915
        %917 = vmatmul.f32.gmra.mxu0 %v710
        %v918 = vpop.f32.mrf.mxu0
        %v919 = vadd.f32 0.0, %v918
        %920 = vmatmul.f32.gmra.mxu0 %v713
        %v921 = vpop.f32.mrf.mxu0
        %v922 = vadd.f32 0.0, %v921
        %923 = vmatmul.f32.gmra.mxu0 %v716
        %v924 = vpop.f32.mrf.mxu0
        %v925 = vadd.f32 0.0, %v924
        %926 = vmatmul.f32.gmra.mxu0 %v719
        %v927 = vpop.f32.mrf.mxu0
        %v928 = vadd.f32 0.0, %v927
        %929 = vmatmul.f32.gmra.mxu0 %v722
        %v930 = vpop.f32.mrf.mxu0
        %v931 = vadd.f32 0.0, %v930
        %932 = vmatmul.f32.gmra.mxu0 %v725
        %v933 = vpop.f32.mrf.mxu0
        %v934 = vadd.f32 0.0, %v933
        %935 = vmatmul.f32.gmra.mxu0 %v728
        %v936 = vpop.f32.mrf.mxu0
        %v937 = vadd.f32 0.0, %v936
        %938 = vmatmul.f32.gmra.mxu0 %v731
        %v939 = vpop.f32.mrf.mxu0
        %v940 = vadd.f32 0.0, %v939
        %941 = vmatmul.f32.gmra.mxu0 %v734
        %v942 = vpop.f32.mrf.mxu0
        %v943 = vadd.f32 0.0, %v942
        %944 = vmatmul.f32.gmra.mxu0 %v737
        %v945 = vpop.f32.mrf.mxu0
        %v946 = vadd.f32 0.0, %v945
        %947 = vmatmul.f32.gmra.mxu0 %v740
        %v948 = vpop.f32.mrf.mxu0
        %v949 = vadd.f32 0.0, %v948
        %950 = vmatmul.f32.gmra.mxu0 %v743
        %v951 = vpop.f32.mrf.mxu0
        %v952 = vadd.f32 0.0, %v951
        %953 = vmatmul.f32.gmra.mxu0 %v746
        %v954 = vpop.f32.mrf.mxu0
        %v955 = vadd.f32 0.0, %v954
        %956 = vmatmul.f32.gmra.mxu0 %v749
        %v957 = vpop.f32.mrf.mxu0
        %v958 = vadd.f32 0.0, %v957
        %959 = vmatmul.f32.gmra.mxu0 %v752
        %v960 = vpop.f32.mrf.mxu0
        %v961 = vadd.f32 0.0, %v960
        %962 = vmatmul.f32.gmra.mxu0 %v755
        %v963 = vpop.f32.mrf.mxu0
        %v964 = vadd.f32 0.0, %v963
        %965 = vmatmul.f32.gmra.mxu0 %v758
        %v966 = vpop.f32.mrf.mxu0
        %v967 = vadd.f32 0.0, %v966
        %968 = vmatmul.f32.gmra.mxu0 %v761
        %v969 = vpop.f32.mrf.mxu0
        %v970 = vadd.f32 0.0, %v969
        %971 = vmatmul.f32.gmra.mxu0 %v764
        %v972 = vpop.f32.mrf.mxu0
        %v973 = vadd.f32 0.0, %v972
        %974 = vmatmul.f32.gmra.mxu0 %v767
        %v975 = vpop.f32.mrf.mxu0
        %v976 = vadd.f32 0.0, %v975
        %977 = vmatmul.f32.gmra.mxu0 %v770
        %v978 = vpop.f32.mrf.mxu0
        %v979 = vadd.f32 0.0, %v978
        %980 = vmatmul.f32.gmra.mxu0 %v773
        %v981 = vpop.f32.mrf.mxu0
        %v982 = vadd.f32 0.0, %v981
        %983 = vmatmul.f32.gmra.mxu0 %v776
        %v984 = vpop.f32.mrf.mxu0
        %v985 = vadd.f32 0.0, %v984
        %986 = vmatmul.f32.gmra.mxu0 %v779
        %v987 = vpop.f32.mrf.mxu0
        %v988 = vadd.f32 0.0, %v987
        %989 = vmatmul.f32.gmra.mxu0 %v782
        %v990 = vpop.f32.mrf.mxu0
        %v991 = vadd.f32 0.0, %v990
        %992 = vmatmul.f32.gmra.mxu0 %v785
        %v993 = vpop.f32.mrf.mxu0
        %v994 = vadd.f32 0.0, %v993
        %995 = vmatmul.f32.gmra.mxu0 %v788
        %v996 = vpop.f32.mrf.mxu0
        %v997 = vadd.f32 0.0, %v996
        %998 = vmatmul.f32.gmra.mxu0 %v791
        %v999 = vpop.f32.mrf.mxu0
        %v1000 = vadd.f32 0.0, %v999
        %1001 = vmatmul.f32.gmra.mxu0 %v794
        %v1002 = vpop.f32.mrf.mxu0
        %v1003 = vadd.f32 0.0, %v1002
        %1004 = vmatmul.f32.gmra.mxu0 %v797
        %v1005 = vpop.f32.mrf.mxu0
        %v1006 = vadd.f32 0.0, %v1005
        %1007 = vmatmul.f32.gmra.mxu0 %v800
        %v1008 = vpop.f32.mrf.mxu0
        %v1009 = vadd.f32 0.0, %v1008
        %1010 = vmatmul.f32.gmra.mxu0 %v803
        %v1011 = vpop.f32.mrf.mxu0
        %v1012 = vadd.f32 0.0, %v1011
        %1013 = vmatmul.f32.gmra.mxu0 %v806
        %v1014 = vpop.f32.mrf.mxu0
        %v1015 = vadd.f32 0.0, %v1014
        %1016 = vmatmul.f32.gmra.mxu0 %v809
        %v1017 = vpop.f32.mrf.mxu0
        %v1018 = vadd.f32 0.0, %v1017
        %1019 = vmatmul.f32.gmra.mxu0 %v812
        %v1020 = vpop.f32.mrf.mxu0
        %v1021 = vadd.f32 0.0, %v1020
        %1022 = vmatmul.f32.gmra.mxu0 %v815
        %v1023 = vpop.f32.mrf.mxu0
        %v1024 = vadd.f32 0.0, %v1023
        %1025 = vmatmul.f32.gmra.mxu0 %v818
        %v1026 = vpop.f32.mrf.mxu0
        %v1027 = vadd.f32 0.0, %v1026
        %1028 = vmatmul.f32.gmra.mxu0 %v821
        %v1029 = vpop.f32.mrf.mxu0
        %v1030 = vadd.f32 0.0, %v1029
        %1031 = vmatmul.f32.gmra.mxu0 %v824
        %v1032 = vpop.f32.mrf.mxu0
        %v1033 = vadd.f32 0.0, %v1032
        %1034 = vmatmul.f32.gmra.mxu0 %v827
        %v1035 = vpop.f32.mrf.mxu0
        %v1036 = vadd.f32 0.0, %v1035
        %1037 = vmatmul.f32.gmra.mxu0 %v830
        %v1038 = vpop.f32.mrf.mxu0
        %v1039 = vadd.f32 0.0, %v1038
        %1040 = vmatmul.f32.gmra.mxu0 %v833
        %v1041 = vpop.f32.mrf.mxu0
        %v1042 = vadd.f32 0.0, %v1041
        %1043 = vmatmul.f32.gmra.mxu0 %v836
        %v1044 = vpop.f32.mrf.mxu0
        %v1045 = vadd.f32 0.0, %v1044
        %1046 = vmatmul.f32.gmra.mxu0 %v839
        %v1047 = vpop.f32.mrf.mxu0
        %v1048 = vadd.f32 0.0, %v1047
        %1049 = vmatmul.f32.gmra.mxu0 %v842
        %v1050 = vpop.f32.mrf.mxu0
        %v1051 = vadd.f32 0.0, %v1050
        %1052 = vmatmul.f32.gmra.mxu0 %v845
        %v1053 = vpop.f32.mrf.mxu0
        %v1054 = vadd.f32 0.0, %v1053
        %1055 = vmatmul.f32.gmra.mxu0 %v848
        %v1056 = vpop.f32.mrf.mxu0
        %v1057 = vadd.f32 0.0, %v1056
        %1058 = vmatmul.f32.gmra.mxu0 %v851
        %v1059 = vpop.f32.mrf.mxu0
        %v1060 = vadd.f32 0.0, %v1059
        %1061 = vmatmul.f32.gmra.mxu0 %v854
        %v1062 = vpop.f32.mrf.mxu0
        %v1063 = vadd.f32 0.0, %v1062
        %1064 = vmatmul.f32.gmra.mxu0 %v857
        %v1065 = vpop.f32.mrf.mxu0
        %v1066 = vadd.f32 0.0, %v1065
        %1067 = vmatmul.f32.gmra.mxu0 %v860
        %v1068 = vpop.f32.mrf.mxu0
        %v1069 = vadd.f32 0.0, %v1068
        %1070 = vmatmul.f32.gmra.mxu0 %v863
        %v1071 = vpop.f32.mrf.mxu0
        %v1072 = vadd.f32 0.0, %v1071
        %1073 = vmatmul.f32.gmra.mxu0 %v866
        %v1074 = vpop.f32.mrf.mxu0
        %v1075 = vadd.f32 0.0, %v1074
        %1076 = vmatmul.f32.gmra.mxu0 %v869
        %v1077 = vpop.f32.mrf.mxu0
        %v1078 = vadd.f32 0.0, %v1077
        %1079 = vmatmul.f32.gmra.mxu0 %v872
        %v1080 = vpop.f32.mrf.mxu0
        %v1081 = vadd.f32 0.0, %v1080
        %1082 = vmatmul.f32.gmra.mxu0 %v875
        %v1083 = vpop.f32.mrf.mxu0
        %v1084 = vadd.f32 0.0, %v1083
        %1085 = vmatmul.f32.gmra.mxu0 %v878
        %v1086 = vpop.f32.mrf.mxu0
        %v1087 = vadd.f32 0.0, %v1086
        %1088 = vmatmul.f32.gmra.mxu0 %v881
        %v1089 = vpop.f32.mrf.mxu0
        %v1090 = vadd.f32 0.0, %v1089
        %1091 = vmatmul.f32.gmra.mxu0 %v884
        %v1092 = vpop.f32.mrf.mxu0
        %v1093 = vadd.f32 0.0, %v1092
        %1094 = vmatmul.f32.gmra.mxu0 %v887
        %v1095 = vpop.f32.mrf.mxu0
        %v1096 = vadd.f32 0.0, %v1095
        %1097 = vmatmul.f32.gmra.mxu0 %v890
        %v1098 = vpop.f32.mrf.mxu0
        %v1099 = vadd.f32 0.0, %v1098
        %1100 = vdwg.mxu0
        %v1101 = vadd.f32 %v627, %v910
        %v1102 = vadd.f32 %v628, %v913
        %v1103 = vadd.f32 %v629, %v916
        %v1104 = vadd.f32 %v630, %v919
        %v1105 = vadd.f32 %v631, %v922
        %v1106 = vadd.f32 %v632, %v925
        %v1107 = vadd.f32 %v633, %v928
        %v1108 = vadd.f32 %v634, %v931
        %v1109 = vadd.f32 %v635, %v934
        %v1110 = vadd.f32 %v636, %v937
        %v1111 = vadd.f32 %v637, %v940
        %v1112 = vadd.f32 %v638, %v943
        %v1113 = vadd.f32 %v639, %v946
        %v1114 = vadd.f32 %v640, %v949
        %v1115 = vadd.f32 %v641, %v952
        %v1116 = vadd.f32 %v642, %v955
        %v1117 = vadd.f32 %v643, %v958
        %v1118 = vadd.f32 %v644, %v961
        %v1119 = vadd.f32 %v645, %v964
        %v1120 = vadd.f32 %v646, %v967
        %v1121 = vadd.f32 %v647, %v970
        %v1122 = vadd.f32 %v648, %v973
        %v1123 = vadd.f32 %v649, %v976
        %v1124 = vadd.f32 %v650, %v979
        %v1125 = vadd.f32 %v651, %v982
        %v1126 = vadd.f32 %v652, %v985
        %v1127 = vadd.f32 %v653, %v988
        %v1128 = vadd.f32 %v654, %v991
        %v1129 = vadd.f32 %v655, %v994
        %v1130 = vadd.f32 %v656, %v997
        %v1131 = vadd.f32 %v657, %v1000
        %v1132 = vadd.f32 %v658, %v1003
        %v1133 = vadd.f32 %v659, %v1006
        %v1134 = vadd.f32 %v660, %v1009
        %v1135 = vadd.f32 %v661, %v1012
        %v1136 = vadd.f32 %v662, %v1015
        %v1137 = vadd.f32 %v663, %v1018
        %v1138 = vadd.f32 %v664, %v1021
        %v1139 = vadd.f32 %v665, %v1024
        %v1140 = vadd.f32 %v666, %v1027
        %v1141 = vadd.f32 %v667, %v1030
        %v1142 = vadd.f32 %v668, %v1033
        %v1143 = vadd.f32 %v669, %v1036
        %v1144 = vadd.f32 %v670, %v1039
        %v1145 = vadd.f32 %v671, %v1042
        %v1146 = vadd.f32 %v672, %v1045
        %v1147 = vadd.f32 %v673, %v1048
        %v1148 = vadd.f32 %v674, %v1051
        %v1149 = vadd.f32 %v675, %v1054
        %v1150 = vadd.f32 %v676, %v1057
        %v1151 = vadd.f32 %v677, %v1060
        %v1152 = vadd.f32 %v678, %v1063
        %v1153 = vadd.f32 %v679, %v1066
        %v1154 = vadd.f32 %v680, %v1069
        %v1155 = vadd.f32 %v681, %v1072
        %v1156 = vadd.f32 %v682, %v1075
        %v1157 = vadd.f32 %v683, %v1078
        %v1158 = vadd.f32 %v684, %v1081
        %v1159 = vadd.f32 %v685, %v1084
        %v1160 = vadd.f32 %v686, %v1087
        %v1161 = vadd.f32 %v687, %v1090
        %v1162 = vadd.f32 %v688, %v1093
        %v1163 = vadd.f32 %v689, %v1096
        %v1164 = vadd.f32 %v690, %v1099
        %1165 = vst [vmem:[#allocation2] sm:$0xff] %v1101
        %1166 = vst [vmem:[#allocation2 + $0x8] sm:$0xff] %v1102
        %1167 = vst [vmem:[#allocation2 + $0x10] sm:$0xff] %v1103
        %1168 = vst [vmem:[#allocation2 + $0x18] sm:$0xff] %v1104
        %1169 = vst [vmem:[#allocation2 + $0x20] sm:$0xff] %v1105
        %1170 = vst [vmem:[#allocation2 + $0x28] sm:$0xff] %v1106
        %1171 = vst [vmem:[#allocation2 + $0x30] sm:$0xff] %v1107
        %1172 = vst [vmem:[#allocation2 + $0x38] sm:$0xff] %v1108
        %1173 = vst [vmem:[#allocation2 + $0x40] sm:$0xff] %v1109
        %1174 = vst [vmem:[#allocation2 + $0x48] sm:$0xff] %v1110
        %1175 = vst [vmem:[#allocation2 + $0x50] sm:$0xff] %v1111
        %1176 = vst [vmem:[#allocation2 + $0x58] sm:$0xff] %v1112
        %1177 = vst [vmem:[#allocation2 + $0x60] sm:$0xff] %v1113
        %1178 = vst [vmem:[#allocation2 + $0x68] sm:$0xff] %v1114
        %1179 = vst [vmem:[#allocation2 + $0x70] sm:$0xff] %v1115
        %1180 = vst [vmem:[#allocation2 + $0x78] sm:$0xff] %v1116
        %1181 = vst [vmem:[#allocation2 + $0x80] sm:$0xff] %v1117
        %1182 = vst [vmem:[#allocation2 + $0x88] sm:$0xff] %v1118
        %1183 = vst [vmem:[#allocation2 + $0x90] sm:$0xff] %v1119
        %1184 = vst [vmem:[#allocation2 + $0x98] sm:$0xff] %v1120
        %1185 = vst [vmem:[#allocation2 + $0xa0] sm:$0xff] %v1121
        %1186 = vst [vmem:[#allocation2 + $0xa8] sm:$0xff] %v1122
        %1187 = vst [vmem:[#allocation2 + $0xb0] sm:$0xff] %v1123
        %1188 = vst [vmem:[#allocation2 + $0xb8] sm:$0xff] %v1124
        %1189 = vst [vmem:[#allocation2 + $0xc0] sm:$0xff] %v1125
        %1190 = vst [vmem:[#allocation2 + $0xc8] sm:$0xff] %v1126
        %1191 = vst [vmem:[#allocation2 + $0xd0] sm:$0xff] %v1127
        %1192 = vst [vmem:[#allocation2 + $0xd8] sm:$0xff] %v1128
        %1193 = vst [vmem:[#allocation2 + $0xe0] sm:$0xff] %v1129
        %1194 = vst [vmem:[#allocation2 + $0xe8] sm:$0xff] %v1130
        %1195 = vst [vmem:[#allocation2 + $0xf0] sm:$0xff] %v1131
        %1196 = vst [vmem:[#allocation2 + $0xf8] sm:$0xff] %v1132
        %1197 = vst [vmem:[#allocation2 + $0x100] sm:$0xff] %v1133
        %1198 = vst [vmem:[#allocation2 + $0x108] sm:$0xff] %v1134
        %1199 = vst [vmem:[#allocation2 + $0x110] sm:$0xff] %v1135
        %1200 = vst [vmem:[#allocation2 + $0x118] sm:$0xff] %v1136
        %1201 = vst [vmem:[#allocation2 + $0x120] sm:$0xff] %v1137
        %1202 = vst [vmem:[#allocation2 + $0x128] sm:$0xff] %v1138
        %1203 = vst [vmem:[#allocation2 + $0x130] sm:$0xff] %v1139
        %1204 = vst [vmem:[#allocation2 + $0x138] sm:$0xff] %v1140
        %1205 = vst [vmem:[#allocation2 + $0x140] sm:$0xff] %v1141
        %1206 = vst [vmem:[#allocation2 + $0x148] sm:$0xff] %v1142
        %1207 = vst [vmem:[#allocation2 + $0x150] sm:$0xff] %v1143
        %1208 = vst [vmem:[#allocation2 + $0x158] sm:$0xff] %v1144
        %1209 = vst [vmem:[#allocation2 + $0x160] sm:$0xff] %v1145
        %1210 = vst [vmem:[#allocation2 + $0x168] sm:$0xff] %v1146
        %1211 = vst [vmem:[#allocation2 + $0x170] sm:$0xff] %v1147
        %1212 = vst [vmem:[#allocation2 + $0x178] sm:$0xff] %v1148
        %1213 = vst [vmem:[#allocation2 + $0x180] sm:$0xff] %v1149
        %1214 = vst [vmem:[#allocation2 + $0x188] sm:$0xff] %v1150
        %1215 = vst [vmem:[#allocation2 + $0x190] sm:$0xff] %v1151
        %1216 = vst [vmem:[#allocation2 + $0x198] sm:$0xff] %v1152
        %1217 = vst [vmem:[#allocation2 + $0x1a0] sm:$0xff] %v1153
        %1218 = vst [vmem:[#allocation2 + $0x1a8] sm:$0xff] %v1154
        %1219 = vst [vmem:[#allocation2 + $0x1b0] sm:$0xff] %v1155
        %1220 = vst [vmem:[#allocation2 + $0x1b8] sm:$0xff] %v1156
        %1221 = vst [vmem:[#allocation2 + $0x1c0] sm:$0xff] %v1157
        %1222 = vst [vmem:[#allocation2 + $0x1c8] sm:$0xff] %v1158
        %1223 = vst [vmem:[#allocation2 + $0x1d0] sm:$0xff] %v1159
        %1224 = vst [vmem:[#allocation2 + $0x1d8] sm:$0xff] %v1160
        %1225 = vst [vmem:[#allocation2 + $0x1e0] sm:$0xff] %v1161
        %1226 = vst [vmem:[#allocation2 + $0x1e8] sm:$0xff] %v1162
        %1227 = vst [vmem:[#allocation2 + $0x1f0] sm:$0xff] %v1163
        %1228 = vst [vmem:[#allocation2 + $0x1f8] sm:$0xff] %v1164
        %p1229 = scmp.eq.s32.totalorder %s22, 1
        %p1230 = scmp.eq.s32.totalorder %s23, 1
        %p1231 = pnand %p1229, %p1230
        %p1232 = pneg %p1231
        // Predicated region
        $region71: #{downsample.1} parent=61 // pred_check
          _
        $region72: #{downsample.1} parent=61 // pred_check_branch
          %1234 = sbr.rel (%p1231) target = $region74
        $region73: #{downsample.1} parent=61 // pred_region
          %v1235 = vld [vmem:[#allocation2] sm:$0xff]
          %v1236 = vld [vmem:[#allocation2 + $0x8] sm:$0xff]
          %v1237 = vld [vmem:[#allocation2 + $0x10] sm:$0xff]
          %v1238 = vld [vmem:[#allocation2 + $0x18] sm:$0xff]
          %v1239 = vld [vmem:[#allocation2 + $0x20] sm:$0xff]
          %v1240 = vld [vmem:[#allocation2 + $0x28] sm:$0xff]
          %v1241 = vld [vmem:[#allocation2 + $0x30] sm:$0xff]
          %v1242 = vld [vmem:[#allocation2 + $0x38] sm:$0xff]
          %v1243 = vld [vmem:[#allocation2 + $0x40] sm:$0xff]
          %v1244 = vld [vmem:[#allocation2 + $0x48] sm:$0xff]
          %v1245 = vld [vmem:[#allocation2 + $0x50] sm:$0xff]
          %v1246 = vld [vmem:[#allocation2 + $0x58] sm:$0xff]
          %v1247 = vld [vmem:[#allocation2 + $0x60] sm:$0xff]
          %v1248 = vld [vmem:[#allocation2 + $0x68] sm:$0xff]
          %v1249 = vld [vmem:[#allocation2 + $0x70] sm:$0xff]
          %v1250 = vld [vmem:[#allocation2 + $0x78] sm:$0xff]
          %v1251 = vld [vmem:[#allocation2 + $0x80] sm:$0xff]
          %v1252 = vld [vmem:[#allocation2 + $0x88] sm:$0xff]
          %v1253 = vld [vmem:[#allocation2 + $0x90] sm:$0xff]
          %v1254 = vld [vmem:[#allocation2 + $0x98] sm:$0xff]
          %v1255 = vld [vmem:[#allocation2 + $0xa0] sm:$0xff]
          %v1256 = vld [vmem:[#allocation2 + $0xa8] sm:$0xff]
          %v1257 = vld [vmem:[#allocation2 + $0xb0] sm:$0xff]
          %v1258 = vld [vmem:[#allocation2 + $0xb8] sm:$0xff]
          %v1259 = vld [vmem:[#allocation2 + $0xc0] sm:$0xff]
          %v1260 = vld [vmem:[#allocation2 + $0xc8] sm:$0xff]
          %v1261 = vld [vmem:[#allocation2 + $0xd0] sm:$0xff]
          %v1262 = vld [vmem:[#allocation2 + $0xd8] sm:$0xff]
          %v1263 = vld [vmem:[#allocation2 + $0xe0] sm:$0xff]
          %v1264 = vld [vmem:[#allocation2 + $0xe8] sm:$0xff]
          %v1265 = vld [vmem:[#allocation2 + $0xf0] sm:$0xff]
          %v1266 = vld [vmem:[#allocation2 + $0xf8] sm:$0xff]
          %v1267 = vld [vmem:[#allocation2 + $0x100] sm:$0xff]
          %v1268 = vld [vmem:[#allocation2 + $0x108] sm:$0xff]
          %v1269 = vld [vmem:[#allocation2 + $0x110] sm:$0xff]
          %v1270 = vld [vmem:[#allocation2 + $0x118] sm:$0xff]
          %v1271 = vld [vmem:[#allocation2 + $0x120] sm:$0xff]
          %v1272 = vld [vmem:[#allocation2 + $0x128] sm:$0xff]
          %v1273 = vld [vmem:[#allocation2 + $0x130] sm:$0xff]
          %v1274 = vld [vmem:[#allocation2 + $0x138] sm:$0xff]
          %v1275 = vld [vmem:[#allocation2 + $0x140] sm:$0xff]
          %v1276 = vld [vmem:[#allocation2 + $0x148] sm:$0xff]
          %v1277 = vld [vmem:[#allocation2 + $0x150] sm:$0xff]
          %v1278 = vld [vmem:[#allocation2 + $0x158] sm:$0xff]
          %v1279 = vld [vmem:[#allocation2 + $0x160] sm:$0xff]
          %v1280 = vld [vmem:[#allocation2 + $0x168] sm:$0xff]
          %v1281 = vld [vmem:[#allocation2 + $0x170] sm:$0xff]
          %v1282 = vld [vmem:[#allocation2 + $0x178] sm:$0xff]
          %v1283 = vld [vmem:[#allocation2 + $0x180] sm:$0xff]
          %v1284 = vld [vmem:[#allocation2 + $0x188] sm:$0xff]
          %v1285 = vld [vmem:[#allocation2 + $0x190] sm:$0xff]
          %v1286 = vld [vmem:[#allocation2 + $0x198] sm:$0xff]
          %v1287 = vld [vmem:[#allocation2 + $0x1a0] sm:$0xff]
          %v1288 = vld [vmem:[#allocation2 + $0x1a8] sm:$0xff]
          %v1289 = vld [vmem:[#allocation2 + $0x1b0] sm:$0xff]
          %v1290 = vld [vmem:[#allocation2 + $0x1b8] sm:$0xff]
          %v1291 = vld [vmem:[#allocation2 + $0x1c0] sm:$0xff]
          %v1292 = vld [vmem:[#allocation2 + $0x1c8] sm:$0xff]
          %v1293 = vld [vmem:[#allocation2 + $0x1d0] sm:$0xff]
          %v1294 = vld [vmem:[#allocation2 + $0x1d8] sm:$0xff]
          %v1295 = vld [vmem:[#allocation2 + $0x1e0] sm:$0xff]
          %v1296 = vld [vmem:[#allocation2 + $0x1e8] sm:$0xff]
          %v1297 = vld [vmem:[#allocation2 + $0x1f0] sm:$0xff]
          %v1298 = vld [vmem:[#allocation2 + $0x1f8] sm:$0xff]
          %1299 = vst [vmem:[%s481] sm:$0xff] %v1235
          %1300 = vst [vmem:[%s481 + $0x8] sm:$0xff] %v1236
          %1301 = vst [vmem:[%s481 + $0x10] sm:$0xff] %v1237
          %1302 = vst [vmem:[%s481 + $0x18] sm:$0xff] %v1238
          %1303 = vst [vmem:[%s481 + $0x20] sm:$0xff] %v1239
          %1304 = vst [vmem:[%s481 + $0x28] sm:$0xff] %v1240
          %1305 = vst [vmem:[%s481 + $0x30] sm:$0xff] %v1241
          %1306 = vst [vmem:[%s481 + $0x38] sm:$0xff] %v1242
          %1307 = vst [vmem:[%s481 + $0x40] sm:$0xff] %v1243
          %1308 = vst [vmem:[%s481 + $0x48] sm:$0xff] %v1244
          %1309 = vst [vmem:[%s481 + $0x50] sm:$0xff] %v1245
          %1310 = vst [vmem:[%s481 + $0x58] sm:$0xff] %v1246
          %1311 = vst [vmem:[%s481 + $0x60] sm:$0xff] %v1247
          %1312 = vst [vmem:[%s481 + $0x68] sm:$0xff] %v1248
          %1313 = vst [vmem:[%s481 + $0x70] sm:$0xff] %v1249
          %1314 = vst [vmem:[%s481 + $0x78] sm:$0xff] %v1250
          %1315 = vst [vmem:[%s481 + $0x80] sm:$0xff] %v1251
          %1316 = vst [vmem:[%s481 + $0x88] sm:$0xff] %v1252
          %1317 = vst [vmem:[%s481 + $0x90] sm:$0xff] %v1253
          %1318 = vst [vmem:[%s481 + $0x98] sm:$0xff] %v1254
          %1319 = vst [vmem:[%s481 + $0xa0] sm:$0xff] %v1255
          %1320 = vst [vmem:[%s481 + $0xa8] sm:$0xff] %v1256
          %1321 = vst [vmem:[%s481 + $0xb0] sm:$0xff] %v1257
          %1322 = vst [vmem:[%s481 + $0xb8] sm:$0xff] %v1258
          %1323 = vst [vmem:[%s481 + $0xc0] sm:$0xff] %v1259
          %1324 = vst [vmem:[%s481 + $0xc8] sm:$0xff] %v1260
          %1325 = vst [vmem:[%s481 + $0xd0] sm:$0xff] %v1261
          %1326 = vst [vmem:[%s481 + $0xd8] sm:$0xff] %v1262
          %1327 = vst [vmem:[%s481 + $0xe0] sm:$0xff] %v1263
          %1328 = vst [vmem:[%s481 + $0xe8] sm:$0xff] %v1264
          %1329 = vst [vmem:[%s481 + $0xf0] sm:$0xff] %v1265
          %1330 = vst [vmem:[%s481 + $0xf8] sm:$0xff] %v1266
          %1331 = vst [vmem:[%s481 + $0x100] sm:$0xff] %v1267
          %1332 = vst [vmem:[%s481 + $0x108] sm:$0xff] %v1268
          %1333 = vst [vmem:[%s481 + $0x110] sm:$0xff] %v1269
          %1334 = vst [vmem:[%s481 + $0x118] sm:$0xff] %v1270
          %1335 = vst [vmem:[%s481 + $0x120] sm:$0xff] %v1271
          %1336 = vst [vmem:[%s481 + $0x128] sm:$0xff] %v1272
          %1337 = vst [vmem:[%s481 + $0x130] sm:$0xff] %v1273
          %1338 = vst [vmem:[%s481 + $0x138] sm:$0xff] %v1274
          %1339 = vst [vmem:[%s481 + $0x140] sm:$0xff] %v1275
          %1340 = vst [vmem:[%s481 + $0x148] sm:$0xff] %v1276
          %1341 = vst [vmem:[%s481 + $0x150] sm:$0xff] %v1277
          %1342 = vst [vmem:[%s481 + $0x158] sm:$0xff] %v1278
          %1343 = vst [vmem:[%s481 + $0x160] sm:$0xff] %v1279
          %1344 = vst [vmem:[%s481 + $0x168] sm:$0xff] %v1280
          %1345 = vst [vmem:[%s481 + $0x170] sm:$0xff] %v1281
          %1346 = vst [vmem:[%s481 + $0x178] sm:$0xff] %v1282
          %1347 = vst [vmem:[%s481 + $0x180] sm:$0xff] %v1283
          %1348 = vst [vmem:[%s481 + $0x188] sm:$0xff] %v1284
          %1349 = vst [vmem:[%s481 + $0x190] sm:$0xff] %v1285
          %1350 = vst [vmem:[%s481 + $0x198] sm:$0xff] %v1286
          %1351 = vst [vmem:[%s481 + $0x1a0] sm:$0xff] %v1287
          %1352 = vst [vmem:[%s481 + $0x1a8] sm:$0xff] %v1288
          %1353 = vst [vmem:[%s481 + $0x1b0] sm:$0xff] %v1289
          %1354 = vst [vmem:[%s481 + $0x1b8] sm:$0xff] %v1290
          %1355 = vst [vmem:[%s481 + $0x1c0] sm:$0xff] %v1291
          %1356 = vst [vmem:[%s481 + $0x1c8] sm:$0xff] %v1292
          %1357 = vst [vmem:[%s481 + $0x1d0] sm:$0xff] %v1293
          %1358 = vst [vmem:[%s481 + $0x1d8] sm:$0xff] %v1294
          %1359 = vst [vmem:[%s481 + $0x1e0] sm:$0xff] %v1295
          %1360 = vst [vmem:[%s481 + $0x1e8] sm:$0xff] %v1296
          %1361 = vst [vmem:[%s481 + $0x1f0] sm:$0xff] %v1297
          %1362 = vst [vmem:[%s481 + $0x1f8] sm:$0xff] %v1298
        $region74: #{downsample.1} parent=61 // pred_fallthru
          _
        %s1363 = sand.u32 %s101, 1
        %s1364 = scalar_lea.sflag [#allocation5], %s1363
        %s1365 = sand.u32 %s101, 1
        %s1366 = smul.addr %s1365, 512
        %s1367 = scalar_lea.vmem [#allocation4], %s1366
        // Predicated region
        $region75: #{downsample.1} parent=61 // pred_check
          %p1368 = pneg %p111
        $region76: #{downsample.1} parent=61 // pred_check_branch
          %1370 = sbr.rel (%p1368) target = $region78
        $region77: #{downsample.1} parent=61 // pred_region
          %s1371 = smul.u32 64, %s21
          %1373 = vsyncadd %s1364, 0
          %s1374 = smul.addr %s1371, 8
          %s1375 = scalar_lea.hbm %s2, %s1374
          %s1376 = sshll.u32 %s1367, 4
          %s1377 = int_to_ptr.vmem [resolvable:$true] %s1376
          %s1378 = sshll.u32 %s1375, 4
          %s1379 = int_to_ptr.hbm [resolvable:$true] %s1378
          %1384 = dma.vmem_to_hbm [thread:$0]  %s1377, 8192, %s1379, %s1364, 128, 128, 8
        $region78: #{downsample.1} parent=61 // pred_fallthru
          _
      $region62: #{downsample.1} parent=5 // pred_fallthru
        _
      %p1385 = scmp.le.s32.totalorder 2, %s11
      // Predicated region
      $region79: #{downsample.1} parent=5 // pred_check
        %p1386 = pneg %p1385
      $region80: #{downsample.1} parent=5 // pred_check_branch
        %1388 = sbr.rel (%p1386) target = $region82
      $region81: #{downsample.1} parent=5 // pred_region
        %s1389 = ssub.s32 %s11, 2
        // Predicated region
        $region83: #{downsample.1} parent=81 // pred_check
          %p1390 = pneg %p117
        $region84: #{downsample.1} parent=81 // pred_check_branch
          %1392 = sbr.rel (%p1390) target = $region86
        $region85: #{downsample.1} parent=81 // pred_region
          %s1393 = sand.u32 %s102, 1
          %s1394 = scalar_lea.sflag [#allocation5], %s1393
          %s1395 = sand.u32 %s102, 1
          %s1396 = smul.addr %s1395, 512
          %s1397 = scalar_lea.vmem [#allocation4], %s1396
          %1399 = dma.done %s1394, 8192
        $region86: #{downsample.1} parent=81 // pred_fallthru
          _
      $region82: #{downsample.1} parent=5 // pred_fallthru
        _
    $region6: #{downsample.1} parent=1 // loop_footer
      %s15 = sadd.s32 1, %s11
    $region7: #{downsample.1} parent=1 // loop_footer_branch
      %10 = sbr.rel target = $region3
    $region8: #{downsample.1} parent=1 // loop_exit
      _
    %1400 = vsyncpa [#allocation5], 1
    %s1401 = scalar_lea.sflag [#allocation5], 1
    %1402 = vsyncpa %s1401, 1

</llo_original>
